<compile_context>
chip_gen: v7x
topology: tpu7x:2x2x1
jax: 0.10.0
libtpu: 0.0.40
codegen_flags: <defaults>
</compile_context>

<pallas_src>
import functools

import jax
import jax.numpy as jnp
from jax.experimental import pallas as pl
from jax.experimental.pallas import tpu as pltpu


# ----------------------------------------------------------------------------
# Fused kernel: nearest-2x upsample + 3x3 "same" conv (+bias) over a virtual
# channel-concat of `n_parts` inputs.
# ----------------------------------------------------------------------------
def _up_conv_kernel(*refs, n_parts, TH, Wout, Cout, cins):
    part_refs = refs[:n_parts]                      # (1, Hs, Ws, cp) f32, per part
    w_refs = refs[n_parts:2 * n_parts]              # (3, 3, cp, Cout) bf16, per part
    bias_ref = refs[2 * n_parts]                    # (1, Cout) f32
    o_ref = refs[2 * n_parts + 1]                   # (1, TH, Wout, Cout) f32
    acc_ref = refs[2 * n_parts + 2]                 # (TH*Wout, Cout) f32 scratch
    slab_refs = refs[2 * n_parts + 3:2 * n_parts + 3 + n_parts]

    Wp = Wout + 2
    th_half = TH // 2
    i = pl.program_id(1)
    n_tiles = pl.num_programs(1)
    pr0 = pl.multiple_of(i * th_half, th_half)      # first source row of this tile

    # ---- build the zero-padded, 2x-upsampled row slab for every concat part ----
    for p in range(n_parts):
        a_ref = part_refs[p]
        slab = slab_refs[p]
        cp = cins[p]

        # conv zero-padding columns; rewritten every step so the persistent
        # scratch never leaks stale data (also safe under megacore sharding).
        zcol = jnp.zeros((TH + 2, 1, cp), jnp.bfloat16)
        slab[:, 0:1, :] = zcol
        slab[:, Wp - 1:Wp, :] = zcol

        # interior rows: nearest-2x upsample of th_half source rows.
        x_src = a_ref[0, pl.ds(pr0, th_half), :, :]                  # (th_half, Ws, cp)
        x_up = jnp.repeat(jnp.repeat(x_src, 2, axis=0), 2, axis=1)   # (TH, Wout, cp)
        slab[1:TH + 1, 1:Wout + 1, :] = x_up.astype(jnp.bfloat16)

        # top halo row: upsampled row (r0 - 1), or conv zero-pad at the image top.
        @pl.when(i == 0)
        def _():
            slab[0:1, 1:Wout + 1, :] = jnp.zeros((1, Wout, cp), jnp.bfloat16)

        @pl.when(i > 0)
        def _():
            top = a_ref[0, pl.ds(pr0 - 1, 1), :, :]                  # (1, Ws, cp)
            slab[0:1, 1:Wout + 1, :] = jnp.repeat(top, 2, axis=1).astype(jnp.bfloat16)

        # bottom halo row: upsampled row (r0 + TH), or zero-pad at the image bottom.
        @pl.when(i == n_tiles - 1)
        def _():
            slab[TH + 1:TH + 2, 1:Wout + 1, :] = jnp.zeros((1, Wout, cp), jnp.bfloat16)

        @pl.when(i < n_tiles - 1)
        def _():
            bot = a_ref[0, pl.ds(pr0 + th_half, 1), :, :]
            slab[TH + 1:TH + 2, 1:Wout + 1, :] = jnp.repeat(bot, 2, axis=1).astype(jnp.bfloat16)

    # ---- 3x3 conv: 9 bf16 MXU matmuls per part into one shared f32 scratch ----
    # TODO(synk): the kw taps are still sublane-shifted slices of the VMEM slab;
    # a pltpu.roll-based tap shift would move that work onto the XLU slot.
    first = True
    for p in range(n_parts):
        slab = slab_refs[p]
        w_ref = w_refs[p]
        cp = cins[p]
        for kh in range(3):
            partial = None
            for kw in range(3):
                xs = slab[kh:kh + TH, kw:kw + Wout, :].reshape(TH * Wout, cp)
                y = jnp.dot(xs, w_ref[kh, kw], preferred_element_type=jnp.float32)
                partial = y if partial is None else partial + y
            if first:
                acc_ref[...] = partial
                first = False
            else:
                acc_ref[...] += partial

    out_tile = acc_ref[...] + bias_ref[...]          # (TH*Wout, Cout) + (1, Cout)
    o_ref[0] = out_tile.reshape(TH, Wout, Cout).astype(o_ref.dtype)


def _pick_out_row_tile(h_out, target=8):
    """Largest even divisor of h_out that is <= target (target tunes VMEM use)."""
    th = min(h_out, target)
    while th > 2 and (h_out % th or th % 2):
        th -= 1
    return th


def upsample_conv3x3(parts, w_splits, bias):
    """Fused nearest-2x upsample + 3x3 'same' conv + bias over a virtual channel
    concat. parts[p]: (N, Hs, Ws, Cp) f32, w_splits[p]: (3, 3, Cp, Cout) bf16,
    bias: (Cout,) f32  ->  (N, 2*Hs, 2*Ws, Cout) f32 (pre-BatchNorm)."""
    n_parts = len(parts)
    N, Hs, Ws, _ = parts[0].shape
    Hout, Wout = 2 * Hs, 2 * Ws
    Cout = w_splits[0].shape[-1]
    cins = tuple(int(p.shape[-1]) for p in parts)
    TH = _pick_out_row_tile(Hout)

    kernel = functools.partial(_up_conv_kernel, n_parts=n_parts, TH=TH,
                               Wout=Wout, Cout=Cout, cins=cins)

    in_specs = [pl.BlockSpec((1, Hs, Ws, cp), lambda n, i: (n, 0, 0, 0))
                for cp in cins]
    in_specs += [pl.BlockSpec((3, 3, cp, Cout), lambda n, i: (0, 0, 0, 0))
                 for cp in cins]
    in_specs.append(pl.BlockSpec((1, Cout), lambda n, i: (0, 0)))

    scratch = [pltpu.VMEM((TH * Wout, Cout), jnp.float32)]
    scratch += [pltpu.VMEM((TH + 2, Wout + 2, cp), jnp.bfloat16) for cp in cins]

    cin_total = sum(cins)
    cost = pl.CostEstimate(
        flops=2 * N * Hout * Wout * cin_total * Cout * 9,
        transcendentals=0,
        bytes_accessed=(4 * sum(int(p.size) for p in parts)
                        + 2 * sum(int(w.size) for w in w_splits)
                        + 4 * N * Hout * Wout * Cout),
    )

    return pl.pallas_call(
        kernel,
        out_shape=jax.ShapeDtypeStruct((N, Hout, Wout, Cout), jnp.float32),
        grid=(N, Hout // TH),
        in_specs=in_specs,
        out_specs=pl.BlockSpec((1, TH, Wout, Cout), lambda n, i: (n, i, 0, 0)),
        scratch_shapes=scratch,
        compiler_params=pltpu.CompilerParams(
            dimension_semantics=("parallel", "parallel")),
        cost_estimate=cost,
    )(*parts, *w_splits, bias.reshape(1, Cout))


# ----------------------------------------------------------------------------
# Tiled two-pass BatchNorm2d (training-mode batch statistics) + ReLU
# ----------------------------------------------------------------------------
def _bn_stats_kernel(x_ref, sum_ref, sq_ref):
    @pl.when(pl.program_id(0) == 0)
    def _():
        sum_ref[...] = jnp.zeros_like(sum_ref)
        sq_ref[...] = jnp.zeros_like(sq_ref)

    x = x_ref[...]                                    # (TR, W*C) f32
    sum_ref[...] += jnp.sum(x, axis=0, keepdims=True)
    sq_ref[...] += jnp.sum(x * x, axis=0, keepdims=True)


def _bn_apply_kernel(x_ref, scale_ref, shift_ref, o_ref):
    y = x_ref[...] * scale_ref[...] + shift_ref[...]  # single FMA per element
    o_ref[...] = jnp.maximum(y, 0.0).astype(o_ref.dtype)


def _pick_bn_row_tile(rows, target=64):
    """Largest multiple-of-8 divisor of rows <= target (falls back to rows)."""
    best = rows
    t = 8
    while t <= min(target, rows // 2):
        if rows % t == 0:
            best = t
        t += 8
    return best


def batchnorm_relu(x, gamma, beta, eps=1e-5):
    """x: (N,H,W,C) f32. Per-channel batch stats over (N,H,W), affine, ReLU."""
    # TODO(synk): if the reference Decoder is evaluated in eval() mode, the batch
    # statistics here must be replaced by running_mean / running_var.
    N, H, W, C = x.shape
    R, WC = N * H, W * C
    xr = x.reshape(R, WC)                 # lane-dense view (layout-preserving)
    TR = _pick_bn_row_tile(R)
    grid = (R // TR,)

    sums, sqs = pl.pallas_call(
        _bn_stats_kernel,
        out_shape=(jax.ShapeDtypeStruct((1, WC), jnp.float32),
                   jax.ShapeDtypeStruct((1, WC), jnp.float32)),
        grid=grid,
        in_specs=[pl.BlockSpec((TR, WC), lambda i: (i, 0))],
        out_specs=(pl.BlockSpec((1, WC), lambda i: (0, 0)),
                   pl.BlockSpec((1, WC), lambda i: (0, 0))),
        compiler_params=pltpu.CompilerParams(
            dimension_semantics=("arbitrary",)),
    )(xr)

    count = float(N * H * W)
    mean = sums.reshape(W, C).sum(axis=0) / count
    var = jnp.maximum(sqs.reshape(W, C).sum(axis=0) / count - mean * mean, 0.0)
    scale = gamma * jax.lax.rsqrt(var + eps)          # hoisted per-channel coeffs
    shift = beta - mean * scale
    scale_wc = jnp.tile(scale, W).reshape(1, WC)
    shift_wc = jnp.tile(shift, W).reshape(1, WC)

    out = pl.pallas_call(
        _bn_apply_kernel,
        out_shape=jax.ShapeDtypeStruct((R, WC), jnp.float32),
        grid=grid,
        in_specs=[pl.BlockSpec((TR, WC), lambda i: (i, 0)),
                  pl.BlockSpec((1, WC), lambda i: (0, 0)),
                  pl.BlockSpec((1, WC), lambda i: (0, 0))],
        out_specs=pl.BlockSpec((TR, WC), lambda i: (i, 0)),
        compiler_params=pltpu.CompilerParams(
            dimension_semantics=("parallel",)),
    )(xr, scale_wc, shift_wc)
    return out.reshape(N, H, W, C)


# ----------------------------------------------------------------------------
# Decoder
# ----------------------------------------------------------------------------
class DecoderPallas:
    """Pallas port of the torch hourglass Decoder (UpBlock2d chain + skips)."""

    def __init__(self, key, block_expansion=64, in_features=44,
                 num_blocks=5, max_features=1024):
        self.block_params = []
        for i in range(num_blocks)[::-1]:
            in_filters = ((1 if i == num_blocks - 1 else 2)
                          * min(max_features, block_expansion * 2 ** (i + 1)))
            out_filters = min(max_features, block_expansion * 2 ** i)
            key, k1, k2, k3, k4 = jax.random.split(key, 5)
            fan_in = in_filters * 9
            bound = 1.0 / (fan_in ** 0.5)
            w = jax.random.uniform(k1, (3, 3, in_filters, out_filters),
                                   jnp.float32, -bound, bound)
            b = jax.random.uniform(k2, (out_filters,), jnp.float32, -bound, bound)
            gamma = jax.random.uniform(k3, (out_filters,), jnp.float32, 0.5, 1.5)
            beta = jax.random.uniform(k4, (out_filters,), jnp.float32, -0.1, 0.1)
            # conv weights stored bf16 for the MXU; accumulation stays f32.
            self.block_params.append(
                (w.astype(jnp.bfloat16), b, gamma, beta, in_filters))
        self.out_filters = block_expansion + in_features

    def __call__(self, feature_pyramid):
        # feature_pyramid: list of NHWC arrays, shallowest (largest) first,
        # deepest (smallest) last -- exactly what x.pop() consumes in torch.
        x = list(feature_pyramid)
        # torch.cat([out, skip], dim=1) between blocks is kept *virtual*: the
        # next conv's weight is split along Cin and both pieces accumulate into
        # the same output (conv(cat(a, b)) == conv_a(a) + conv_b(b)).
        parts = [x.pop()]
        for (w, b, gamma, beta, in_filters) in self.block_params:
            splits, off = [], 0
            for p in parts:
                cp = p.shape[-1]
                splits.append(w[:, :, off:off + cp, :])
                off += cp
            assert off == in_filters, (off, in_filters)
            out = upsample_conv3x3(parts, splits, b)
            out = batchnorm_relu(out, gamma, beta)
            parts = [out, x.pop()]
        # only the decoder's final concat is ever materialized.
        return jnp.concatenate(parts, axis=-1)


# ----------------------------------------------------------------------------
# Main
# ----------------------------------------------------------------------------
if __name__ == "__main__":
    # Small hyperparameters consistent with the Decoder definition.
    block_expansion = 8
    in_features = 4
    num_blocks = 3
    max_features = 32
    batch = 2
    spatial = 16

    key = jax.random.PRNGKey(0)
    key, pkey = jax.random.split(key)
    decoder = DecoderPallas(pkey, block_expansion=block_expansion,
                            in_features=in_features, num_blocks=num_blocks,
                            max_features=max_features)

    # Encoder-style feature pyramid (NHWC):
    #   level 0: raw input (in_features channels, full resolution)
    #   level k: min(max_features, block_expansion * 2**k) channels, res / 2**k
    pyramid = []
    for lvl in range(num_blocks + 1):
        ch = in_features if lvl == 0 else min(max_features,
                                              block_expansion * 2 ** lvl)
        hw = spatial // (2 ** lvl)
        key, sub = jax.random.split(key)
        pyramid.append(jax.random.normal(sub, (batch, hw, hw, ch), jnp.float32))

    out = decoder(pyramid)
    out = jax.block_until_ready(out)

    expected = (batch, spatial, spatial, decoder.out_filters)
    assert out.shape == expected, (out.shape, expected)
    assert bool(jnp.all(jnp.isfinite(out)))
    print("KERNEL_OK")
</pallas_src>

<mosaic_0001>
module attributes {stable_mosaic.version = 11 : i64} {
  func.func @_up_conv_kernel(%arg0: i32, %arg1: i32, %arg2: memref<1x2x2x32xf32, #tpu.memory_space<vmem>>, %arg3: memref<3x3x32x32xbf16, #tpu.memory_space<vmem>>, %arg4: memref<1x32xf32, #tpu.memory_space<vmem>>, %arg5: memref<1x4x4x32xf32, #tpu.memory_space<vmem>>, %arg6: memref<16x32xf32, #tpu.memory_space<vmem>>, %arg7: memref<6x6x32xbf16, #tpu.memory_space<vmem>>) attributes {dimension_semantics = [#tpu.dimension_semantics<parallel>, #tpu.dimension_semantics<parallel>], iteration_bounds = array<i64: 2, 1>, scalar_prefetch = 0 : i64, scratch_operands = 2 : i64, tpu.core_type = #tpu.core_type<tc>, window_params = [{transform_indices = @transform_0, window_bounds = array<i64: 1, 2, 2, 32>}, {pipeline_mode = #tpu.pipeline_mode<synchronous>, transform_indices = @transform_1, window_bounds = array<i64: 3, 3, 32, 32>}, {pipeline_mode = #tpu.pipeline_mode<synchronous>, transform_indices = @transform_2, window_bounds = array<i64: 1, 32>}, {transform_indices = @transform_3, window_bounds = array<i64: 1, 4, 4, 32>}]} {
    %c2_i32 = arith.constant 2 : i32
    %0 = arith.muli %arg1, %c2_i32 : i32
    %1 = tpu.assume_multiple %0, 2 : i32
    %cst = arith.constant 0.000000e+00 : bf16
    %2 = vector.broadcast %cst : bf16 to vector<6x1x32xbf16>
    %c0 = arith.constant 0 : index
    %c0_0 = arith.constant 0 : index
    %c0_1 = arith.constant 0 : index
    %3 = vector.load %arg7[%c0, %c0_0, %c0_1] : memref<6x6x32xbf16, #tpu.memory_space<vmem>>, vector<6x1x32xbf16>
    tpu.vector_store %arg7[%c0, %c0_0, %c0_1], %2 {strides = array<i32>} : memref<6x6x32xbf16, #tpu.memory_space<vmem>>, vector<6x1x32xbf16>,
    %c0_2 = arith.constant 0 : index
    %c5 = arith.constant 5 : index
    %c0_3 = arith.constant 0 : index
    %4 = vector.load %arg7[%c0_2, %c5, %c0_3] : memref<6x6x32xbf16, #tpu.memory_space<vmem>>, vector<6x1x32xbf16>
    tpu.vector_store %arg7[%c0_2, %c5, %c0_3], %2 {strides = array<i32>} : memref<6x6x32xbf16, #tpu.memory_space<vmem>>, vector<6x1x32xbf16>,
    %c0_4 = arith.constant 0 : index
    %5 = arith.index_cast %1 : i32 to index
    %c0_5 = arith.constant 0 : index
    %c0_6 = arith.constant 0 : index
    %6 = vector.load %arg2[%c0_4, %5, %c0_5, %c0_6] : memref<1x2x2x32xf32, #tpu.memory_space<vmem>>, vector<1x2x2x32xf32>
    %7 = vector.shape_cast %6 : vector<1x2x2x32xf32> to vector<2x2x32xf32>
    %8 = vector.shape_cast %7 : vector<2x2x32xf32> to vector<2x1x2x32xf32>
    %9 = vector.broadcast %8 : vector<2x1x2x32xf32> to vector<2x2x2x32xf32>
    %10 = vector.shape_cast %9 : vector<2x2x2x32xf32> to vector<4x2x32xf32>
    %11 = vector.shape_cast %10 : vector<4x2x32xf32> to vector<4x2x1x32xf32>
    %12 = vector.broadcast %11 : vector<4x2x1x32xf32> to vector<4x2x2x32xf32>
    %13 = vector.shape_cast %12 : vector<4x2x2x32xf32> to vector<4x4x32xf32>
    %14 = arith.truncf %13 : vector<4x4x32xf32> to vector<4x4x32xbf16>
    %c1 = arith.constant 1 : index
    %c1_7 = arith.constant 1 : index
    %c0_8 = arith.constant 0 : index
    %15 = vector.load %arg7[%c1, %c1_7, %c0_8] : memref<6x6x32xbf16, #tpu.memory_space<vmem>>, vector<4x4x32xbf16>
    tpu.vector_store %arg7[%c1, %c1_7, %c0_8], %14 {strides = array<i32>} : memref<6x6x32xbf16, #tpu.memory_space<vmem>>, vector<4x4x32xbf16>,
    %c0_i32 = arith.constant 0 : i32
    %16 = arith.cmpi eq, %arg1, %c0_i32 : i32
    %17 = arith.extui %16 : i1 to i32
    %c0_i32_9 = arith.constant 0 : i32
    %18 = arith.cmpi ne, %17, %c0_i32_9 : i32
    scf.if %18 {
      %cst_105 = arith.constant 0.000000e+00 : bf16
      %94 = vector.broadcast %cst_105 : bf16 to vector<1x4x32xbf16>
      %c0_106 = arith.constant 0 : index
      %c1_107 = arith.constant 1 : index
      %c0_108 = arith.constant 0 : index
      %95 = vector.load %arg7[%c0_106, %c1_107, %c0_108] : memref<6x6x32xbf16, #tpu.memory_space<vmem>>, vector<1x4x32xbf16>
      tpu.vector_store %arg7[%c0_106, %c1_107, %c0_108], %94 {strides = array<i32>} : memref<6x6x32xbf16, #tpu.memory_space<vmem>>, vector<1x4x32xbf16>,
    } else {
    }
    %c0_i32_10 = arith.constant 0 : i32
    %19 = arith.cmpi sgt, %arg1, %c0_i32_10 : i32
    %20 = arith.extui %19 : i1 to i32
    %c0_i32_11 = arith.constant 0 : i32
    %21 = arith.cmpi ne, %20, %c0_i32_11 : i32
    scf.if %21 {
      %c1_i32 = arith.constant 1 : i32
      %94 = arith.subi %1, %c1_i32 : i32
      %c0_105 = arith.constant 0 : index
      %95 = arith.index_cast %94 : i32 to index
      %c0_106 = arith.constant 0 : index
      %c0_107 = arith.constant 0 : index
      %96 = vector.load %arg2[%c0_105, %95, %c0_106, %c0_107] : memref<1x2x2x32xf32, #tpu.memory_space<vmem>>, vector<1x1x2x32xf32>
      %97 = vector.shape_cast %96 : vector<1x1x2x32xf32> to vector<1x2x32xf32>
      %98 = vector.shape_cast %97 : vector<1x2x32xf32> to vector<1x2x1x32xf32>
      %99 = vector.broadcast %98 : vector<1x2x1x32xf32> to vector<1x2x2x32xf32>
      %100 = vector.shape_cast %99 : vector<1x2x2x32xf32> to vector<1x4x32xf32>
      %101 = arith.truncf %100 : vector<1x4x32xf32> to vector<1x4x32xbf16>
      %c0_108 = arith.constant 0 : index
      %c1_109 = arith.constant 1 : index
      %c0_110 = arith.constant 0 : index
      %102 = vector.load %arg7[%c0_108, %c1_109, %c0_110] : memref<6x6x32xbf16, #tpu.memory_space<vmem>>, vector<1x4x32xbf16>
      tpu.vector_store %arg7[%c0_108, %c1_109, %c0_110], %101 {strides = array<i32>} : memref<6x6x32xbf16, #tpu.memory_space<vmem>>, vector<1x4x32xbf16>,
    } else {
    }
    %c0_i32_12 = arith.constant 0 : i32
    %22 = arith.cmpi eq, %arg1, %c0_i32_12 : i32
    %23 = arith.extui %22 : i1 to i32
    %c0_i32_13 = arith.constant 0 : i32
    %24 = arith.cmpi ne, %23, %c0_i32_13 : i32
    scf.if %24 {
      %cst_105 = arith.constant 0.000000e+00 : bf16
      %94 = vector.broadcast %cst_105 : bf16 to vector<1x4x32xbf16>
      %c5_106 = arith.constant 5 : index
      %c1_107 = arith.constant 1 : index
      %c0_108 = arith.constant 0 : index
      %95 = vector.load %arg7[%c5_106, %c1_107, %c0_108] : memref<6x6x32xbf16, #tpu.memory_space<vmem>>, vector<1x4x32xbf16>
      tpu.vector_store %arg7[%c5_106, %c1_107, %c0_108], %94 {strides = array<i32>} : memref<6x6x32xbf16, #tpu.memory_space<vmem>>, vector<1x4x32xbf16>,
    } else {
    }
    %c0_i32_14 = arith.constant 0 : i32
    %25 = arith.cmpi slt, %arg1, %c0_i32_14 : i32
    %26 = arith.extui %25 : i1 to i32
    %c0_i32_15 = arith.constant 0 : i32
    %27 = arith.cmpi ne, %26, %c0_i32_15 : i32
    scf.if %27 {
      %c2_i32_105 = arith.constant 2 : i32
      %94 = arith.addi %1, %c2_i32_105 : i32
      %c0_106 = arith.constant 0 : index
      %95 = arith.index_cast %94 : i32 to index
      %c0_107 = arith.constant 0 : index
      %c0_108 = arith.constant 0 : index
      %96 = vector.load %arg2[%c0_106, %95, %c0_107, %c0_108] : memref<1x2x2x32xf32, #tpu.memory_space<vmem>>, vector<1x1x2x32xf32>
      %97 = vector.shape_cast %96 : vector<1x1x2x32xf32> to vector<1x2x32xf32>
      %98 = vector.shape_cast %97 : vector<1x2x32xf32> to vector<1x2x1x32xf32>
      %99 = vector.broadcast %98 : vector<1x2x1x32xf32> to vector<1x2x2x32xf32>
      %100 = vector.shape_cast %99 : vector<1x2x2x32xf32> to vector<1x4x32xf32>
      %101 = arith.truncf %100 : vector<1x4x32xf32> to vector<1x4x32xbf16>
      %c5_109 = arith.constant 5 : index
      %c1_110 = arith.constant 1 : index
      %c0_111 = arith.constant 0 : index
      %102 = vector.load %arg7[%c5_109, %c1_110, %c0_111] : memref<6x6x32xbf16, #tpu.memory_space<vmem>>, vector<1x4x32xbf16>
      tpu.vector_store %arg7[%c5_109, %c1_110, %c0_111], %101 {strides = array<i32>} : memref<6x6x32xbf16, #tpu.memory_space<vmem>>, vector<1x4x32xbf16>,
    } else {
    }
    %c0_16 = arith.constant 0 : index
    %c0_17 = arith.constant 0 : index
    %c0_18 = arith.constant 0 : index
    %28 = vector.load %arg7[%c0_16, %c0_17, %c0_18] : memref<6x6x32xbf16, #tpu.memory_space<vmem>>, vector<4x4x32xbf16>
    %29 = vector.shape_cast %28 : vector<4x4x32xbf16> to vector<16x32xbf16>
    %c0_19 = arith.constant 0 : index
    %c0_20 = arith.constant 0 : index
    %c0_21 = arith.constant 0 : index
    %c0_22 = arith.constant 0 : index
    %30 = vector.load %arg3[%c0_19, %c0_20, %c0_21, %c0_22] : memref<3x3x32x32xbf16, #tpu.memory_space<vmem>>, vector<1x1x32x32xbf16>
    %31 = vector.shape_cast %30 : vector<1x1x32x32xbf16> to vector<32x32xbf16>
    %cst_23 = arith.constant dense<0.000000e+00> : vector<16x32xf32>
    %32 = tpu.matmul %29, %31, %cst_23 {dimension_numbers = #tpu.dot_dimension_numbers<[1], [0], [0], [1], [0, 0, 1, 1], [], []>} : vector<16x32xbf16>, vector<32x32xbf16>, vector<16x32xf32> -> vector<16x32xf32>
    %c0_24 = arith.constant 0 : index
    %c1_25 = arith.constant 1 : index
    %c0_26 = arith.constant 0 : index
    %33 = vector.load %arg7[%c0_24, %c1_25, %c0_26] : memref<6x6x32xbf16, #tpu.memory_space<vmem>>, vector<4x4x32xbf16>
    %34 = vector.shape_cast %33 : vector<4x4x32xbf16> to vector<16x32xbf16>
    %c0_27 = arith.constant 0 : index
    %c1_28 = arith.constant 1 : index
    %c0_29 = arith.constant 0 : index
    %c0_30 = arith.constant 0 : index
    %35 = vector.load %arg3[%c0_27, %c1_28, %c0_29, %c0_30] : memref<3x3x32x32xbf16, #tpu.memory_space<vmem>>, vector<1x1x32x32xbf16>
    %36 = vector.shape_cast %35 : vector<1x1x32x32xbf16> to vector<32x32xbf16>
    %cst_31 = arith.constant dense<0.000000e+00> : vector<16x32xf32>
    %37 = tpu.matmul %34, %36, %cst_31 {dimension_numbers = #tpu.dot_dimension_numbers<[1], [0], [0], [1], [0, 0, 1, 1], [], []>} : vector<16x32xbf16>, vector<32x32xbf16>, vector<16x32xf32> -> vector<16x32xf32>
    %38 = arith.addf %32, %37 : vector<16x32xf32>
    %c0_32 = arith.constant 0 : index
    %c2 = arith.constant 2 : index
    %c0_33 = arith.constant 0 : index
    %39 = vector.load %arg7[%c0_32, %c2, %c0_33] : memref<6x6x32xbf16, #tpu.memory_space<vmem>>, vector<4x4x32xbf16>
    %40 = vector.shape_cast %39 : vector<4x4x32xbf16> to vector<16x32xbf16>
    %c0_34 = arith.constant 0 : index
    %c2_35 = arith.constant 2 : index
    %c0_36 = arith.constant 0 : index
    %c0_37 = arith.constant 0 : index
    %41 = vector.load %arg3[%c0_34, %c2_35, %c0_36, %c0_37] : memref<3x3x32x32xbf16, #tpu.memory_space<vmem>>, vector<1x1x32x32xbf16>
    %42 = vector.shape_cast %41 : vector<1x1x32x32xbf16> to vector<32x32xbf16>
    %cst_38 = arith.constant dense<0.000000e+00> : vector<16x32xf32>
    %43 = tpu.matmul %40, %42, %cst_38 {dimension_numbers = #tpu.dot_dimension_numbers<[1], [0], [0], [1], [0, 0, 1, 1], [], []>} : vector<16x32xbf16>, vector<32x32xbf16>, vector<16x32xf32> -> vector<16x32xf32>
    %44 = arith.addf %38, %43 : vector<16x32xf32>
    %c0_39 = arith.constant 0 : index
    %c0_40 = arith.constant 0 : index
    %45 = vector.load %arg6[%c0_39, %c0_40] : memref<16x32xf32, #tpu.memory_space<vmem>>, vector<16x32xf32>
    tpu.vector_store %arg6[%c0_39, %c0_40], %44 {strides = array<i32>} : memref<16x32xf32, #tpu.memory_space<vmem>>, vector<16x32xf32>,
    %c1_41 = arith.constant 1 : index
    %c0_42 = arith.constant 0 : index
    %c0_43 = arith.constant 0 : index
    %46 = vector.load %arg7[%c1_41, %c0_42, %c0_43] : memref<6x6x32xbf16, #tpu.memory_space<vmem>>, vector<4x4x32xbf16>
    %47 = vector.shape_cast %46 : vector<4x4x32xbf16> to vector<16x32xbf16>
    %c1_44 = arith.constant 1 : index
    %c0_45 = arith.constant 0 : index
    %c0_46 = arith.constant 0 : index
    %c0_47 = arith.constant 0 : index
    %48 = vector.load %arg3[%c1_44, %c0_45, %c0_46, %c0_47] : memref<3x3x32x32xbf16, #tpu.memory_space<vmem>>, vector<1x1x32x32xbf16>
    %49 = vector.shape_cast %48 : vector<1x1x32x32xbf16> to vector<32x32xbf16>
    %cst_48 = arith.constant dense<0.000000e+00> : vector<16x32xf32>
    %50 = tpu.matmul %47, %49, %cst_48 {dimension_numbers = #tpu.dot_dimension_numbers<[1], [0], [0], [1], [0, 0, 1, 1], [], []>} : vector<16x32xbf16>, vector<32x32xbf16>, vector<16x32xf32> -> vector<16x32xf32>
    %c1_49 = arith.constant 1 : index
    %c1_50 = arith.constant 1 : index
    %c0_51 = arith.constant 0 : index
    %51 = vector.load %arg7[%c1_49, %c1_50, %c0_51] : memref<6x6x32xbf16, #tpu.memory_space<vmem>>, vector<4x4x32xbf16>
    %52 = vector.shape_cast %51 : vector<4x4x32xbf16> to vector<16x32xbf16>
    %c1_52 = arith.constant 1 : index
    %c1_53 = arith.constant 1 : index
    %c0_54 = arith.constant 0 : index
    %c0_55 = arith.constant 0 : index
    %53 = vector.load %arg3[%c1_52, %c1_53, %c0_54, %c0_55] : memref<3x3x32x32xbf16, #tpu.memory_space<vmem>>, vector<1x1x32x32xbf16>
    %54 = vector.shape_cast %53 : vector<1x1x32x32xbf16> to vector<32x32xbf16>
    %cst_56 = arith.constant dense<0.000000e+00> : vector<16x32xf32>
    %55 = tpu.matmul %52, %54, %cst_56 {dimension_numbers = #tpu.dot_dimension_numbers<[1], [0], [0], [1], [0, 0, 1, 1], [], []>} : vector<16x32xbf16>, vector<32x32xbf16>, vector<16x32xf32> -> vector<16x32xf32>
    %56 = arith.addf %50, %55 : vector<16x32xf32>
    %c1_57 = arith.constant 1 : index
    %c2_58 = arith.constant 2 : index
    %c0_59 = arith.constant 0 : index
    %57 = vector.load %arg7[%c1_57, %c2_58, %c0_59] : memref<6x6x32xbf16, #tpu.memory_space<vmem>>, vector<4x4x32xbf16>
    %58 = vector.shape_cast %57 : vector<4x4x32xbf16> to vector<16x32xbf16>
    %c1_60 = arith.constant 1 : index
    %c2_61 = arith.constant 2 : index
    %c0_62 = arith.constant 0 : index
    %c0_63 = arith.constant 0 : index
    %59 = vector.load %arg3[%c1_60, %c2_61, %c0_62, %c0_63] : memref<3x3x32x32xbf16, #tpu.memory_space<vmem>>, vector<1x1x32x32xbf16>
    %60 = vector.shape_cast %59 : vector<1x1x32x32xbf16> to vector<32x32xbf16>
    %cst_64 = arith.constant dense<0.000000e+00> : vector<16x32xf32>
    %61 = tpu.matmul %58, %60, %cst_64 {dimension_numbers = #tpu.dot_dimension_numbers<[1], [0], [0], [1], [0, 0, 1, 1], [], []>} : vector<16x32xbf16>, vector<32x32xbf16>, vector<16x32xf32> -> vector<16x32xf32>
    %62 = arith.addf %56, %61 : vector<16x32xf32>
    %c0_65 = arith.constant 0 : index
    %c0_66 = arith.constant 0 : index
    %63 = vector.load %arg6[%c0_65, %c0_66] : memref<16x32xf32, #tpu.memory_space<vmem>>, vector<16x32xf32>
    %64 = arith.addf %63, %62 : vector<16x32xf32>
    %c0_67 = arith.constant 0 : index
    %c0_68 = arith.constant 0 : index
    %65 = vector.load %arg6[%c0_67, %c0_68] : memref<16x32xf32, #tpu.memory_space<vmem>>, vector<16x32xf32>
    tpu.vector_store %arg6[%c0_67, %c0_68], %64 {strides = array<i32>} : memref<16x32xf32, #tpu.memory_space<vmem>>, vector<16x32xf32>,
    %c2_69 = arith.constant 2 : index
    %c0_70 = arith.constant 0 : index
    %c0_71 = arith.constant 0 : index
    %66 = vector.load %arg7[%c2_69, %c0_70, %c0_71] : memref<6x6x32xbf16, #tpu.memory_space<vmem>>, vector<4x4x32xbf16>
    %67 = vector.shape_cast %66 : vector<4x4x32xbf16> to vector<16x32xbf16>
    %c2_72 = arith.constant 2 : index
    %c0_73 = arith.constant 0 : index
    %c0_74 = arith.constant 0 : index
    %c0_75 = arith.constant 0 : index
    %68 = vector.load %arg3[%c2_72, %c0_73, %c0_74, %c0_75] : memref<3x3x32x32xbf16, #tpu.memory_space<vmem>>, vector<1x1x32x32xbf16>
    %69 = vector.shape_cast %68 : vector<1x1x32x32xbf16> to vector<32x32xbf16>
    %cst_76 = arith.constant dense<0.000000e+00> : vector<16x32xf32>
    %70 = tpu.matmul %67, %69, %cst_76 {dimension_numbers = #tpu.dot_dimension_numbers<[1], [0], [0], [1], [0, 0, 1, 1], [], []>} : vector<16x32xbf16>, vector<32x32xbf16>, vector<16x32xf32> -> vector<16x32xf32>
    %c2_77 = arith.constant 2 : index
    %c1_78 = arith.constant 1 : index
    %c0_79 = arith.constant 0 : index
    %71 = vector.load %arg7[%c2_77, %c1_78, %c0_79] : memref<6x6x32xbf16, #tpu.memory_space<vmem>>, vector<4x4x32xbf16>
    %72 = vector.shape_cast %71 : vector<4x4x32xbf16> to vector<16x32xbf16>
    %c2_80 = arith.constant 2 : index
    %c1_81 = arith.constant 1 : index
    %c0_82 = arith.constant 0 : index
    %c0_83 = arith.constant 0 : index
    %73 = vector.load %arg3[%c2_80, %c1_81, %c0_82, %c0_83] : memref<3x3x32x32xbf16, #tpu.memory_space<vmem>>, vector<1x1x32x32xbf16>
    %74 = vector.shape_cast %73 : vector<1x1x32x32xbf16> to vector<32x32xbf16>
    %cst_84 = arith.constant dense<0.000000e+00> : vector<16x32xf32>
    %75 = tpu.matmul %72, %74, %cst_84 {dimension_numbers = #tpu.dot_dimension_numbers<[1], [0], [0], [1], [0, 0, 1, 1], [], []>} : vector<16x32xbf16>, vector<32x32xbf16>, vector<16x32xf32> -> vector<16x32xf32>
    %76 = arith.addf %70, %75 : vector<16x32xf32>
    %c2_85 = arith.constant 2 : index
    %c2_86 = arith.constant 2 : index
    %c0_87 = arith.constant 0 : index
    %77 = vector.load %arg7[%c2_85, %c2_86, %c0_87] : memref<6x6x32xbf16, #tpu.memory_space<vmem>>, vector<4x4x32xbf16>
    %78 = vector.shape_cast %77 : vector<4x4x32xbf16> to vector<16x32xbf16>
    %c2_88 = arith.constant 2 : index
    %c2_89 = arith.constant 2 : index
    %c0_90 = arith.constant 0 : index
    %c0_91 = arith.constant 0 : index
    %79 = vector.load %arg3[%c2_88, %c2_89, %c0_90, %c0_91] : memref<3x3x32x32xbf16, #tpu.memory_space<vmem>>, vector<1x1x32x32xbf16>
    %80 = vector.shape_cast %79 : vector<1x1x32x32xbf16> to vector<32x32xbf16>
    %cst_92 = arith.constant dense<0.000000e+00> : vector<16x32xf32>
    %81 = tpu.matmul %78, %80, %cst_92 {dimension_numbers = #tpu.dot_dimension_numbers<[1], [0], [0], [1], [0, 0, 1, 1], [], []>} : vector<16x32xbf16>, vector<32x32xbf16>, vector<16x32xf32> -> vector<16x32xf32>
    %82 = arith.addf %76, %81 : vector<16x32xf32>
    %c0_93 = arith.constant 0 : index
    %c0_94 = arith.constant 0 : index
    %83 = vector.load %arg6[%c0_93, %c0_94] : memref<16x32xf32, #tpu.memory_space<vmem>>, vector<16x32xf32>
    %84 = arith.addf %83, %82 : vector<16x32xf32>
    %c0_95 = arith.constant 0 : index
    %c0_96 = arith.constant 0 : index
    %85 = vector.load %arg6[%c0_95, %c0_96] : memref<16x32xf32, #tpu.memory_space<vmem>>, vector<16x32xf32>
    tpu.vector_store %arg6[%c0_95, %c0_96], %84 {strides = array<i32>} : memref<16x32xf32, #tpu.memory_space<vmem>>, vector<16x32xf32>,
    %c0_97 = arith.constant 0 : index
    %c0_98 = arith.constant 0 : index
    %86 = vector.load %arg6[%c0_97, %c0_98] : memref<16x32xf32, #tpu.memory_space<vmem>>, vector<16x32xf32>
    %c0_99 = arith.constant 0 : index
    %c0_100 = arith.constant 0 : index
    %87 = vector.load %arg4[%c0_99, %c0_100] : memref<1x32xf32, #tpu.memory_space<vmem>>, vector<1x32xf32>
    %88 = vector.broadcast %87 : vector<1x32xf32> to vector<16x32xf32>
    %89 = arith.addf %86, %88 : vector<16x32xf32>
    %90 = vector.shape_cast %89 : vector<16x32xf32> to vector<4x4x32xf32>
    %c0_101 = arith.constant 0 : index
    %c0_102 = arith.constant 0 : index
    %c0_103 = arith.constant 0 : index
    %c0_104 = arith.constant 0 : index
    %91 = vector.load %arg5[%c0_101, %c0_102, %c0_103, %c0_104] : memref<1x4x4x32xf32, #tpu.memory_space<vmem>>, vector<1x4x4x32xf32>
    %92 = vector.shape_cast %91 : vector<1x4x4x32xf32> to vector<4x4x32xf32>
    %93 = vector.shape_cast %90 : vector<4x4x32xf32> to vector<1x4x4x32xf32>
    tpu.vector_store %arg5[%c0_101, %c0_102, %c0_103, %c0_104], %93 {strides = array<i32>} : memref<1x4x4x32xf32, #tpu.memory_space<vmem>>, vector<1x4x4x32xf32>,
    return
  }
  func.func @transform_0(%arg0: i32, %arg1: i32) -> (i32, i32, i32, i32) {
    %c0_i32 = arith.constant 0 : i32
    %c0_i32_0 = arith.constant 0 : i32
    %c0_i32_1 = arith.constant 0 : i32
    %c0_i32_2 = arith.constant 0 : i32
    return %arg0, %c0_i32, %c0_i32_0, %c0_i32_1 : i32, i32, i32, i32
  }
  func.func @transform_1(%arg0: i32, %arg1: i32) -> (i32, i32, i32, i32) {
    %c0_i32 = arith.constant 0 : i32
    %c0_i32_0 = arith.constant 0 : i32
    %c0_i32_1 = arith.constant 0 : i32
    %c0_i32_2 = arith.constant 0 : i32
    %c0_i32_3 = arith.constant 0 : i32
    return %c0_i32, %c0_i32_0, %c0_i32_1, %c0_i32_2 : i32, i32, i32, i32
  }
  func.func @transform_2(%arg0: i32, %arg1: i32) -> (i32, i32) {
    %c0_i32 = arith.constant 0 : i32
    %c0_i32_0 = arith.constant 0 : i32
    %c0_i32_1 = arith.constant 0 : i32
    return %c0_i32, %c0_i32_0 : i32, i32
  }
  func.func @transform_3(%arg0: i32, %arg1: i32) -> (i32, i32, i32, i32) {
    %c0_i32 = arith.constant 0 : i32
    %c0_i32_0 = arith.constant 0 : i32
    %c0_i32_1 = arith.constant 0 : i32
    return %arg0, %arg1, %c0_i32, %c0_i32_0 : i32, i32, i32, i32
  }
}

</mosaic_0001>

<llo_original>
// kernel: tpu_custom_call.1
$region0: #{tpu_custom_call.1}
  #allocation0 [shape = 'u32[]', space=smem, size = 0x4, offset = 0x4, fixed_abs, tag = 'smem constant byte address 0x4 - core index']
  #allocation1 [shape = 'u32[144,128]{1,0:T(1,128)}', space=vmem, size = 0x12000, scoped, tag = 'internal scratch']
  #allocation2 [shape = 'f32[16,32]{1,0:T(8,128)}', space=vmem, size = 0x2000, scoped, tag = 'scratch operand']
  #allocation3 [shape = 'bf16[6,6,32]{2,1,0:T(8,128)(2,1)}', space=vmem, size = 0x3000, scoped, tag = 'scratch operand']
  %s0 = inlined_call_operand.hbm [shape: f32[2,2,2,32], index: 0, kind: input, shape index: {}]
  %s1 = inlined_call_operand.hbm [shape: bf16[3,3,32,32], index: 1, kind: input, shape index: {}]
  %s2 = inlined_call_operand.vmem [shape: f32[1,32], index: 2, kind: input, shape index: {}]
  %s3 = inlined_call_operand.hbm [shape: f32[2,4,4,32], index: 3, kind: output, shape index: {}]
  %s4 = sld [smem:[#allocation0]]
  $region69: #{tpu_custom_call.1} parent=0
    _
  %s6 = ssub.s32 1, %s4
  %s7 = scalar_select 0, %s6, %s4
  $region1: #{tpu_custom_call.1} parent=0
    #allocation4 [shape = 'u8[4096]{0}', space=vmem, size = 0x1000, scoped, tag = 'input window, operand 0']
    #allocation5 [shape = 's32[2]{0}', space=sflag, size = 0x8, scoped, tag = 'scoped memory for tpu_custom_call.1']
    #allocation6 [shape = 's32[2]{0}', space=sflag, size = 0x8, scoped, tag = 'scoped memory for tpu_custom_call.1']
    #allocation7 [shape = 'u8[73728]{0}', space=vmem, size = 0x12000, scoped, tag = 'input window, operand 1, single buffered']
    #allocation8 [shape = 's32[1]{0}', space=sflag, size = 0x4, scoped, tag = 'scoped memory for tpu_custom_call.1']
    #allocation9 [shape = 'u8[16384]{0}', space=vmem, size = 0x4000, scoped, tag = 'output window, operand 0']
    %8 = vsyncpa [#allocation5], 0
    %s9 = scalar_lea.sflag [#allocation5], 1
    %10 = vsyncpa %s9, 0
    %11 = vsyncpa [#allocation8], 0
    %12 = vsyncpa [#allocation6], 0
    %s13 = scalar_lea.sflag [#allocation6], 1
    %14 = vsyncpa %s13, 0
    loop: start=0, step=1, limit=4
    $region2: #{tpu_custom_call.1} parent=1 // loop_pre_header
      _
    $region3: #{tpu_custom_call.1} parent=1 // loop_header
      %s16 = sphi 0, %s20
      %p17 = scmp.ge.s32.totalorder %s16, 4
      %s23 = sphi 0, %s35
      %s24 = sphi 0, %s31
      %s25 = sphi 0, %s23
      %s26 = sphi 0, %s24
      %s27 = sphi 0, %s25
      %s28 = sphi 0, %s26
      %s38 = sphi 0, %s40
      %s41 = sphi 0, %s38
      %s42 = sphi 0, %s41
      %s58 = sphi 0, %s42
      %s62 = sphi 0, %s62
      %s64 = sphi 0, %s62
      %s65 = sphi 0, %s64
      %s79 = sphi 0, %s65
      %s83 = sphi 0, %s83
      %s85 = sphi 0, %s83
      %s86 = sphi 0, %s85
      %s100 = sphi 0, %s86
      %s108 = sphi 0, %s110
      %s111 = sphi 0, %s108
      %s112 = sphi 0, %s111
      %s128 = sphi 0, %s112
    $region4: #{tpu_custom_call.1} parent=1 // loop_header_branch
      %19 = sbr.rel (%p17) target = $region8
    $region5: #{tpu_custom_call.1} parent=1 // loop_body
      %s21 = ssub.s32 %s16, 1
      %s22 = ssub.s32 %s16, 2
      %s29 = sadd.s32 1, %s24
      %p30 = scmp.ge.s32.totalorder %s29, 1
      %s31 = scalar_select %p30, 0, %s29
      %s32 = sadd.s32 1, %s23
      %s33 = scalar_select %p30, %s32, %s23
      %p34 = scmp.ge.s32.totalorder %s33, 2
      %s35 = scalar_select %p34, 0, %s33
      %s36 = ssub.s32 %s23, %s35
      %p37 = scmp.eq.s32.totalorder %s36, 0
      %s39 = sadd.s32 %s38, 1
      %s40 = scalar_select %p37, %s38, %s39
      %p43 = pneg %p37
      %p44 = scmp.eq.s32.totalorder %s16, 1
      %p45 = por %p43, %p44
      %p46 = scmp.ne.s32.totalorder %s38, %s41
      %p47 = scmp.eq.s32.totalorder %s16, 0
      %p48 = por %p46, %p47
      %p49 = scmp.ne.s32.totalorder %s38, %s41
      %p50 = scmp.eq.s32.totalorder %s21, 1
      %p51 = por %p49, %p50
      %p52 = scmp.ne.s32.totalorder %s41, %s42
      %p53 = scmp.eq.s32.totalorder %s21, 0
      %p54 = por %p52, %p53
      %p55 = scmp.ne.s32.totalorder %s41, %s42
      %p56 = scmp.eq.s32.totalorder %s22, 1
      %p57 = por %p55, %p56
      %p59 = scmp.ne.s32.totalorder %s42, %s58
      %p60 = scmp.eq.s32.totalorder %s22, 0
      %p61 = por %p59, %p60
      %s63 = sadd.s32 %s62, 1
      %p66 = scmp.eq.s32.totalorder %s16, 1
      %p67 = scmp.ne.s32.totalorder %s62, %s64
      %p68 = scmp.eq.s32.totalorder %s16, 0
      %p69 = por %p67, %p68
      %p70 = scmp.ne.s32.totalorder %s62, %s64
      %p71 = scmp.eq.s32.totalorder %s21, 1
      %p72 = por %p70, %p71
      %p73 = scmp.ne.s32.totalorder %s64, %s65
      %p74 = scmp.eq.s32.totalorder %s21, 0
      %p75 = por %p73, %p74
      %p76 = scmp.ne.s32.totalorder %s64, %s65
      %p77 = scmp.eq.s32.totalorder %s22, 1
      %p78 = por %p76, %p77
      %p80 = scmp.ne.s32.totalorder %s65, %s79
      %p81 = scmp.eq.s32.totalorder %s22, 0
      %p82 = por %p80, %p81
      %s84 = sadd.s32 %s83, 1
      %p87 = scmp.eq.s32.totalorder %s16, 1
      %p88 = scmp.ne.s32.totalorder %s83, %s85
      %p89 = scmp.eq.s32.totalorder %s16, 0
      %p90 = por %p88, %p89
      %p91 = scmp.ne.s32.totalorder %s83, %s85
      %p92 = scmp.eq.s32.totalorder %s21, 1
      %p93 = por %p91, %p92
      %p94 = scmp.ne.s32.totalorder %s85, %s86
      %p95 = scmp.eq.s32.totalorder %s21, 0
      %p96 = por %p94, %p95
      %p97 = scmp.ne.s32.totalorder %s85, %s86
      %p98 = scmp.eq.s32.totalorder %s22, 1
      %p99 = por %p97, %p98
      %p101 = scmp.ne.s32.totalorder %s86, %s100
      %p102 = scmp.eq.s32.totalorder %s22, 0
      %p103 = por %p101, %p102
      %s104 = ssub.s32 %s23, %s35
      %s105 = ssub.s32 %s24, %s31
      %s106 = sor.u32 %s104, %s105
      %p107 = scmp.eq.s32.totalorder %s106, 0
      %s109 = sadd.s32 %s108, 1
      %s110 = scalar_select %p107, %s108, %s109
      %p113 = pneg %p107
      %p114 = scmp.eq.s32.totalorder %s16, 1
      %p115 = por %p113, %p114
      %p116 = scmp.ne.s32.totalorder %s108, %s111
      %p117 = scmp.eq.s32.totalorder %s16, 0
      %p118 = por %p116, %p117
      %p119 = scmp.ne.s32.totalorder %s108, %s111
      %p120 = scmp.eq.s32.totalorder %s21, 1
      %p121 = por %p119, %p120
      %p122 = scmp.ne.s32.totalorder %s111, %s112
      %p123 = scmp.eq.s32.totalorder %s21, 0
      %p124 = por %p122, %p123
      %p125 = scmp.ne.s32.totalorder %s111, %s112
      %p126 = scmp.eq.s32.totalorder %s22, 1
      %p127 = por %p125, %p126
      %p129 = scmp.ne.s32.totalorder %s112, %s128
      %p130 = scmp.eq.s32.totalorder %s22, 0
      %p131 = por %p129, %p130
      %p132 = scmp.le.s32.totalorder 1, %s16
      %p133 = scmp.lt.s32.totalorder %s16, 3
      %p134 = pnand %p132, %p133
      %p135 = pneg %p134
      // Predicated region
      $region9: #{tpu_custom_call.1} parent=5 // pred_check
        _
      $region10: #{tpu_custom_call.1} parent=5 // pred_check_branch
        %137 = sbr.rel (%p134) target = $region12
      $region11: #{tpu_custom_call.1} parent=5 // pred_region
        %s138 = ssub.s32 %s16, 1
        // Predicated region
        $region13: #{tpu_custom_call.1} parent=11 // pred_check
          %p139 = pneg %p75
        $region14: #{tpu_custom_call.1} parent=11 // pred_check_branch
          %141 = sbr.rel (%p139) target = $region16
        $region15: #{tpu_custom_call.1} parent=11 // pred_region
          %s143 = ssub.s32 2304, 2304
          %144 = vsyncadd [#allocation8], %s143
          %s145 = sshll.u32 [#allocation7], 4
          %s146 = int_to_ptr.vmem [resolvable:$true] %s145
          %151 = dma.hbm_to_vmem [thread:$0]  %s1, 2304, %s146, [#allocation8], 64, 64, 4
        $region16: #{tpu_custom_call.1} parent=11 // pred_fallthru
          _
        // Predicated region
        $region17: #{tpu_custom_call.1} parent=11 // pred_check
          %p152 = pneg %p96
        $region18: #{tpu_custom_call.1} parent=11 // pred_check_branch
          %154 = sbr.rel (%p152) target = $region20
        $region19: #{tpu_custom_call.1} parent=11 // pred_region
          _
        $region20: #{tpu_custom_call.1} parent=11 // pred_fallthru
          _
      $region12: #{tpu_custom_call.1} parent=5 // pred_fallthru
        _
      %p155 = scmp.lt.s32.totalorder %s16, 2
      // Predicated region
      $region21: #{tpu_custom_call.1} parent=5 // pred_check
        %p156 = pneg %p155
      $region22: #{tpu_custom_call.1} parent=5 // pred_check_branch
        %158 = sbr.rel (%p156) target = $region24
      $region23: #{tpu_custom_call.1} parent=5 // pred_region
        // Predicated region
        $region25: #{tpu_custom_call.1} parent=23 // pred_check
          %p159 = pneg %p48
        $region26: #{tpu_custom_call.1} parent=23 // pred_check_branch
          %161 = sbr.rel (%p159) target = $region28
        $region27: #{tpu_custom_call.1} parent=23 // pred_region
          %s162 = sand.u32 %s38, 1
          %s163 = scalar_lea.sflag [#allocation5], %s162
          %s164 = sand.u32 %s38, 1
          %s165 = smul.addr %s164, 4
          %s166 = scalar_lea.vmem [#allocation4], %s165
          %s168 = ssub.s32 64, 64
          %169 = vsyncadd %s163, %s168
          %s170 = smul.addr %s23, 2
          %s171 = smul.addr %s170, 32
          %s172 = scalar_lea.hbm %s0, %s171
          %s173 = sshll.u32 %s166, 4
          %s174 = int_to_ptr.vmem [resolvable:$true] %s173
          %179 = dma.hbm_to_vmem [thread:$0]  %s172, 64, %s174, %s163, 32, 32, 2
        $region28: #{tpu_custom_call.1} parent=23 // pred_fallthru
          _
      $region24: #{tpu_custom_call.1} parent=5 // pred_fallthru
        _
      %p180 = scmp.le.s32.totalorder 1, %s16
      %p181 = scmp.lt.s32.totalorder %s16, 3
      %p182 = pnand %p180, %p181
      %p183 = pneg %p182
      // Predicated region
      $region29: #{tpu_custom_call.1} parent=5 // pred_check
        _
      $region30: #{tpu_custom_call.1} parent=5 // pred_check_branch
        %185 = sbr.rel (%p182) target = $region32
      $region31: #{tpu_custom_call.1} parent=5 // pred_region
        %s186 = ssub.s32 %s16, 1
        %s187 = sand.u32 %s41, 1
        %s188 = scalar_lea.sflag [#allocation5], %s187
        %s189 = sand.u32 %s41, 1
        %s190 = smul.addr %s189, 4
        %s191 = scalar_lea.vmem [#allocation4], %s190
        // Predicated region
        $region33: #{tpu_custom_call.1} parent=31 // pred_check
          %p192 = pneg %p54
        $region34: #{tpu_custom_call.1} parent=31 // pred_check_branch
          %194 = sbr.rel (%p192) target = $region36
        $region35: #{tpu_custom_call.1} parent=31 // pred_region
          %195 = dma.done %s188, 64
        $region36: #{tpu_custom_call.1} parent=31 // pred_fallthru
          _
        // Predicated region
        $region37: #{tpu_custom_call.1} parent=31 // pred_check
          %p196 = pneg %p75
        $region38: #{tpu_custom_call.1} parent=31 // pred_check_branch
          %198 = sbr.rel (%p196) target = $region40
        $region39: #{tpu_custom_call.1} parent=31 // pred_region
          %199 = dma.done [#allocation8], 2304
        $region40: #{tpu_custom_call.1} parent=31 // pred_fallthru
          _
        %s200 = sand.u32 %s41, 1
        %s201 = scalar_lea.sflag [#allocation5], %s200
        %s202 = sand.u32 %s41, 1
        %s203 = smul.addr %s202, 4
        %s204 = scalar_lea.vmem [#allocation4], %s203
        %p205 = pneg %p54
        %p206 = pneg %p51
        %p207 = pneg %p75
        %p208 = pneg %p72
        %p209 = pneg %p96
        %p210 = pneg %p93
        %p211 = pneg %p124
        %p212 = pneg %p121
        %s213 = sand.u32 %s111, 1
        %s214 = scalar_lea.sflag [#allocation6], %s213
        %s215 = sand.u32 %s111, 1
        %s216 = smul.addr %s215, 16
        %s217 = scalar_lea.vmem [#allocation9], %s216
        %s218 = smul.u32 4, %s26
        %s220 = smul.u32 %s26, 2
        %vm221 = vcmask 253952
        %vm222 = vsmask.f32 256
        %vm223 = vmand %vm221, %vm222
        %v224 = vld [vmem:[#allocation3] sm:$0x1]
        %v225 = vsel %vm223, 0, %v224
        %226 = vst [vmem:[#allocation3] sm:$0x1] %v225
        %v227 = vld [vmem:[#allocation3 + $0x4] sm:$0x1]
        %v228 = vsel %vm223, 0, %v227
        %229 = vst [vmem:[#allocation3 + $0x4] sm:$0x1] %v228
        %v230 = vld [vmem:[#allocation3 + $0x8] sm:$0x1]
        %v231 = vsel %vm223, 0, %v230
        %232 = vst [vmem:[#allocation3 + $0x8] sm:$0x1] %v231
        %v233 = vld [vmem:[#allocation3 + $0xc] sm:$0x1]
        %v234 = vsel %vm223, 0, %v233
        %235 = vst [vmem:[#allocation3 + $0xc] sm:$0x1] %v234
        %v236 = vld [vmem:[#allocation3 + $0x10] sm:$0x1]
        %v237 = vsel %vm223, 0, %v236
        %238 = vst [vmem:[#allocation3 + $0x10] sm:$0x1] %v237
        %v239 = vld [vmem:[#allocation3 + $0x14] sm:$0x1]
        %v240 = vsel %vm223, 0, %v239
        %241 = vst [vmem:[#allocation3 + $0x14] sm:$0x1] %v240
        %vm242 = vcmask 256002
        %vm243 = vsmask.f32 7946
        %vm244 = vmand %vm242, %vm243
        %v245 = vld [vmem:[#allocation3] sm:$0x4]
        %v246 = vsel %vm244, 0, %v245
        %247 = vst [vmem:[#allocation3] sm:$0x4] %v246
        %v248 = vld [vmem:[#allocation3 + $0x4] sm:$0x4]
        %v249 = vsel %vm244, 0, %v248
        %250 = vst [vmem:[#allocation3 + $0x4] sm:$0x4] %v249
        %v251 = vld [vmem:[#allocation3 + $0x8] sm:$0x4]
        %v252 = vsel %vm244, 0, %v251
        %253 = vst [vmem:[#allocation3 + $0x8] sm:$0x4] %v252
        %v254 = vld [vmem:[#allocation3 + $0xc] sm:$0x4]
        %v255 = vsel %vm244, 0, %v254
        %256 = vst [vmem:[#allocation3 + $0xc] sm:$0x4] %v255
        %v257 = vld [vmem:[#allocation3 + $0x10] sm:$0x4]
        %v258 = vsel %vm244, 0, %v257
        %259 = vst [vmem:[#allocation3 + $0x10] sm:$0x4] %v258
        %v260 = vld [vmem:[#allocation3 + $0x14] sm:$0x4]
        %v261 = vsel %vm244, 0, %v260
        %262 = vst [vmem:[#allocation3 + $0x14] sm:$0x4] %v261
        %s263 = smul.u32 %s220, 2
        %s264 = scalar_lea.vmem %s191, %s263 [#allocation4]
        %v265 = vld [vmem:[%s264] sm:$0x3]
        %v266 = vld [vmem:[%s264 + $0x2] sm:$0x3]
        %v270 = vunpack.c.l.s4 1966171168
        %v271 = vunpack.c.0.s8 %v270
        %v272 = vlaneseq
        %v273 = vshrl.u32 %v272, 7
        %v274 = vsub.s32 %v271, %v273
        %v275 = vrot.slane %v265, %v274
        %v276 = vcombine.high %v275, %v275
        %v278 = vunpack.c.l.s4 1966171168
        %v279 = vunpack.c.0.s8 %v278
        %v280 = vlaneseq
        %v281 = vshrl.u32 %v280, 7
        %v282 = vsub.s32 %v279, %v281
        %v283 = vrot.slane %v275, %v282
        %v285 = vunpack.c.l.s4 1966171168
        %v286 = vunpack.c.0.s8 %v285
        %v287 = vlaneseq
        %v288 = vshrl.u32 %v287, 7
        %v289 = vsub.s32 %v286, %v288
        %v290 = vrot.slane %v276, %v289
        %v292 = vunpack.c.l.s4 1966171168
        %v293 = vunpack.c.0.s8 %v292
        %v294 = vlaneseq
        %v295 = vshrl.u32 %v294, 7
        %v296 = vsub.s32 %v293, %v295
        %v297 = vrot.slane %v266, %v296
        %v298 = vcombine.high %v297, %v297
        %v300 = vunpack.c.l.s4 1966171168
        %v301 = vunpack.c.0.s8 %v300
        %v302 = vlaneseq
        %v303 = vshrl.u32 %v302, 7
        %v304 = vsub.s32 %v301, %v303
        %v305 = vrot.slane %v297, %v304
        %v307 = vunpack.c.l.s4 1966171168
        %v308 = vunpack.c.0.s8 %v307
        %v309 = vlaneseq
        %v310 = vshrl.u32 %v309, 7
        %v311 = vsub.s32 %v308, %v310
        %v312 = vrot.slane %v298, %v311
        %v313 = vlaneseq
        %v314 = vshrl.u32 %v313, 7
        %v315 = vsub.s32 0, %v314
        %v316 = vrot.slane %v283, %v315
        %v317 = vlaneseq
        %v318 = vshrl.u32 %v317, 7
        %v319 = vsub.s32 0, %v318
        %v320 = vrot.slane %v290, %v319
        %v321 = vlaneseq
        %v322 = vshrl.u32 %v321, 7
        %v323 = vsub.s32 0, %v322
        %v324 = vrot.slane %v305, %v323
        %v325 = vlaneseq
        %v326 = vshrl.u32 %v325, 7
        %v327 = vsub.s32 0, %v326
        %v328 = vrot.slane %v312, %v327
        %v329 = vcombine.low %v316, %v320
        %v331 = vunpack.c.l.s4 1983009808
        %v332 = vunpack.c.0.s8 %v331
        %v333 = vlaneseq
        %v334 = vshrl.u32 %v333, 7
        %v335 = vsub.s32 %v332, %v334
        %v336 = vrot.slane %v329, %v335
        %v337 = vcombine.low %v324, %v328
        %v339 = vunpack.c.l.s4 1983009808
        %v340 = vunpack.c.0.s8 %v339
        %v341 = vlaneseq
        %v342 = vshrl.u32 %v341, 7
        %v343 = vsub.s32 %v340, %v342
        %v344 = vrot.slane %v337, %v343
        %v347 = vpack.c.bf16 %v336, %v336
        %v348 = vpack.c.bf16 %v344, %v344
        %v351 = vunpack.c.l.b16 %v347
        %v352 = vunpack.c.l.b16 %v348
        %v353 = vpack.c.b16 %v351, %v351
        %v354 = vpack.c.b16 %v352, %v352
        %v356 = vshrl.u32 %v353, 16
        %v358 = vrot.slane %v356, 7
        %v359 = vshll.u32 %v353, 16
        %v361 = vor.u32 %v358, %v359
        %v363 = vshrl.u32 %v354, 16
        %v365 = vrot.slane %v363, 7
        %v366 = vshll.u32 %v354, 16
        %v368 = vor.u32 %v365, %v366
        %s371 = scalar_lea.vmem [#allocation3], 4
        %vm372 = vcmask 256000
        %vm373 = vsmask.f32 2306
        %vm374 = vmand %vm372, %vm373
        %v375 = vld [vmem:[%s371] sm:$0x7]
        %v376 = vsel %vm374, %v361, %v375
        %377 = vst [vmem:[%s371] sm:$0x7] %v376
        %v378 = vld [vmem:[%s371 + $0x4] sm:$0x7]
        %v379 = vsel %vm374, %v361, %v378
        %380 = vst [vmem:[%s371 + $0x4] sm:$0x7] %v379
        %v381 = vld [vmem:[%s371 + $0x8] sm:$0x7]
        %v382 = vsel %vm374, %v368, %v381
        %383 = vst [vmem:[%s371 + $0x8] sm:$0x7] %v382
        %v384 = vld [vmem:[%s371 + $0xc] sm:$0x7]
        %v385 = vsel %vm374, %v368, %v384
        %386 = vst [vmem:[%s371 + $0xc] sm:$0x7] %v385
        %p387 = scmp.eq.s32.totalorder %s26, 0
        // Predicated region
        $region41: #{tpu_custom_call.1} parent=31 // pred_check
          %p388 = pneg %p387
        $region42: #{tpu_custom_call.1} parent=31 // pred_check_branch
          %390 = sbr.rel (%p388) target = $region44
        $region43: #{tpu_custom_call.1} parent=31 // pred_region
          %v391 = vld [vmem:[#allocation3] sm:$0x7]
          %v392 = vsel %vm374, 0, %v391
          %393 = vst [vmem:[#allocation3] sm:$0x7] %v392
        $region44: #{tpu_custom_call.1} parent=31 // pred_fallthru
          _
        %p394 = scmp.gt.s32.totalorder %s26, 0
        // Predicated region
        $region45: #{tpu_custom_call.1} parent=31 // pred_check
          %p395 = pneg %p394
        $region46: #{tpu_custom_call.1} parent=31 // pred_check_branch
          %397 = sbr.rel (%p395) target = $region48
        $region47: #{tpu_custom_call.1} parent=31 // pred_region
          %s398 = ssub.s32 %s220, 1
          %s399 = smul.u32 %s398, 2
          %s400 = scalar_lea.vmem %s191, %s399 [#allocation4]
          %v401 = vld [vmem:[%s400] sm:$0x3]
          %v404 = vunpack.c.l.s4 1966171168
          %v405 = vunpack.c.0.s8 %v404
          %v406 = vlaneseq
          %v407 = vshrl.u32 %v406, 7
          %v408 = vsub.s32 %v405, %v407
          %v409 = vrot.slane %v401, %v408
          %v410 = vcombine.high %v409, %v409
          %v412 = vunpack.c.l.s4 1966171168
          %v413 = vunpack.c.0.s8 %v412
          %v414 = vlaneseq
          %v415 = vshrl.u32 %v414, 7
          %v416 = vsub.s32 %v413, %v415
          %v417 = vrot.slane %v409, %v416
          %v419 = vunpack.c.l.s4 1966171168
          %v420 = vunpack.c.0.s8 %v419
          %v421 = vlaneseq
          %v422 = vshrl.u32 %v421, 7
          %v423 = vsub.s32 %v420, %v422
          %v424 = vrot.slane %v410, %v423
          %v425 = vlaneseq
          %v426 = vshrl.u32 %v425, 7
          %v427 = vsub.s32 0, %v426
          %v428 = vrot.slane %v417, %v427
          %v429 = vlaneseq
          %v430 = vshrl.u32 %v429, 7
          %v431 = vsub.s32 0, %v430
          %v432 = vrot.slane %v424, %v431
          %v433 = vcombine.low %v428, %v432
          %v435 = vunpack.c.l.s4 1983009808
          %v436 = vunpack.c.0.s8 %v435
          %v437 = vlaneseq
          %v438 = vshrl.u32 %v437, 7
          %v439 = vsub.s32 %v436, %v438
          %v440 = vrot.slane %v433, %v439
          %v442 = vpack.c.bf16 %v440, %v440
          %v444 = vunpack.c.l.b16 %v442
          %v445 = vpack.c.b16 %v444, %v444
          %v447 = vshrl.u32 %v445, 16
          %v449 = vrot.slane %v447, 7
          %v450 = vshll.u32 %v445, 16
          %v452 = vor.u32 %v449, %v450
          %v454 = vld [vmem:[#allocation3] sm:$0x7]
          %v455 = vsel %vm374, %v452, %v454
          %456 = vst [vmem:[#allocation3] sm:$0x7] %v455
        $region48: #{tpu_custom_call.1} parent=31 // pred_fallthru
          _
        // Predicated region
        $region49: #{tpu_custom_call.1} parent=31 // pred_check
          %p457 = pneg %p387
        $region50: #{tpu_custom_call.1} parent=31 // pred_check_branch
          %459 = sbr.rel (%p457) target = $region52
        $region51: #{tpu_custom_call.1} parent=31 // pred_region
          %s460 = scalar_lea.vmem [#allocation3], 20
          %v461 = vld [vmem:[%s460] sm:$0x7]
          %v462 = vsel %vm374, 0, %v461
          %463 = vst [vmem:[%s460] sm:$0x7] %v462
        $region52: #{tpu_custom_call.1} parent=31 // pred_fallthru
          _
        %p464 = scmp.lt.s32.totalorder %s26, 0
        // Predicated region
        $region53: #{tpu_custom_call.1} parent=31 // pred_check
          %p465 = pneg %p464
        $region54: #{tpu_custom_call.1} parent=31 // pred_check_branch
          %467 = sbr.rel (%p465) target = $region56
        $region55: #{tpu_custom_call.1} parent=31 // pred_region
          %s468 = sadd.s32 %s220, 2
          %s469 = smul.u32 %s468, 2
          %s470 = scalar_lea.vmem %s191, %s469 [#allocation4]
          %v471 = vld [vmem:[%s470] sm:$0x3]
          %v474 = vunpack.c.l.s4 1966171168
          %v475 = vunpack.c.0.s8 %v474
          %v476 = vlaneseq
          %v477 = vshrl.u32 %v476, 7
          %v478 = vsub.s32 %v475, %v477
          %v479 = vrot.slane %v471, %v478
          %v480 = vcombine.high %v479, %v479
          %v482 = vunpack.c.l.s4 1966171168
          %v483 = vunpack.c.0.s8 %v482
          %v484 = vlaneseq
          %v485 = vshrl.u32 %v484, 7
          %v486 = vsub.s32 %v483, %v485
          %v487 = vrot.slane %v479, %v486
          %v489 = vunpack.c.l.s4 1966171168
          %v490 = vunpack.c.0.s8 %v489
          %v491 = vlaneseq
          %v492 = vshrl.u32 %v491, 7
          %v493 = vsub.s32 %v490, %v492
          %v494 = vrot.slane %v480, %v493
          %v495 = vlaneseq
          %v496 = vshrl.u32 %v495, 7
          %v497 = vsub.s32 0, %v496
          %v498 = vrot.slane %v487, %v497
          %v499 = vlaneseq
          %v500 = vshrl.u32 %v499, 7
          %v501 = vsub.s32 0, %v500
          %v502 = vrot.slane %v494, %v501
          %v503 = vcombine.low %v498, %v502
          %v505 = vunpack.c.l.s4 1983009808
          %v506 = vunpack.c.0.s8 %v505
          %v507 = vlaneseq
          %v508 = vshrl.u32 %v507, 7
          %v509 = vsub.s32 %v506, %v508
          %v510 = vrot.slane %v503, %v509
          %v512 = vpack.c.bf16 %v510, %v510
          %v514 = vunpack.c.l.b16 %v512
          %v515 = vpack.c.b16 %v514, %v514
          %v517 = vshrl.u32 %v515, 16
          %v519 = vrot.slane %v517, 7
          %v520 = vshll.u32 %v515, 16
          %v522 = vor.u32 %v519, %v520
          %s524 = scalar_lea.vmem [#allocation3], 20
          %v525 = vld [vmem:[%s524] sm:$0x7]
          %v526 = vsel %vm374, %v522, %v525
          %527 = vst [vmem:[%s524] sm:$0x7] %v526
        $region56: #{tpu_custom_call.1} parent=31 // pred_fallthru
          _
        %v528 = vld [vmem:[#allocation3] sm:$0x3]
        %v529 = vld [vmem:[#allocation3 + $0x4] sm:$0x3]
        %v530 = vld [vmem:[#allocation3 + $0x8] sm:$0x3]
        %v531 = vld [vmem:[#allocation3 + $0xc] sm:$0x3]
        %v532 = vld [vmem:[#allocation7] sm:$0xf]
        %v533 = vld [vmem:[#allocation7 + $0x4] sm:$0xf]
        %v534 = vld [vmem:[#allocation7 + $0x8] sm:$0xf]
        %v535 = vld [vmem:[#allocation7 + $0xc] sm:$0xf]
        %v536 = vld [vmem:[#allocation3] sm:$0x7]
        %v537 = vld [vmem:[#allocation3 + $0x4] sm:$0x7]
        %v538 = vld [vmem:[#allocation3 + $0x8] sm:$0x7]
        %v539 = vld [vmem:[#allocation3 + $0xc] sm:$0x7]
        %v545 = vunpack.c.l.s4 1983009808
        %v546 = vunpack.c.0.s8 %v545
        %v547 = vlaneseq
        %v548 = vshrl.u32 %v547, 7
        %v549 = vsub.s32 %v546, %v548
        %v550 = vrot.slane %v536, %v549
        %v551 = vcombine.high %v550, %v550
        %v553 = vunpack.c.l.s4 1983009808
        %v554 = vunpack.c.0.s8 %v553
        %v555 = vlaneseq
        %v556 = vshrl.u32 %v555, 7
        %v557 = vsub.s32 %v554, %v556
        %v558 = vrot.slane %v537, %v557
        %v559 = vcombine.high %v558, %v558
        %v561 = vunpack.c.l.s4 1983009808
        %v562 = vunpack.c.0.s8 %v561
        %v563 = vlaneseq
        %v564 = vshrl.u32 %v563, 7
        %v565 = vsub.s32 %v562, %v564
        %v566 = vrot.slane %v538, %v565
        %v567 = vcombine.high %v566, %v566
        %v569 = vunpack.c.l.s4 1983009808
        %v570 = vunpack.c.0.s8 %v569
        %v571 = vlaneseq
        %v572 = vshrl.u32 %v571, 7
        %v573 = vsub.s32 %v570, %v572
        %v574 = vrot.slane %v539, %v573
        %v575 = vcombine.high %v574, %v574
        %vm576 = vsmask.f32 1280
        %vm577 = vsmask.f32 3336
        %vm578 = vmor %vm576, %vm577
        %vm579 = vsmask.f32 5392
        %vm580 = vmor %vm578, %vm579
        %vm581 = vsmask.f32 7448
        %vm582 = vmor %vm580, %vm581
        %v584 = vshrl.u32 %v550, 16
        %v586 = vrot.slane %v584, 6
        %v587 = vshll.u32 %v550, 16
        %v589 = vrot.slane %v587, 7
        %v590 = vor.u32 %v586, %v589
        %v591 = vrot.slane %v590, 2
        %v593 = vshll.u32 %v551, 16
        %v595 = vrot.slane %v593, 7
        %v596 = vsel %vm582, %v591, %v595
        %v598 = vshrl.u32 %v558, 16
        %v600 = vrot.slane %v598, 6
        %v601 = vshll.u32 %v558, 16
        %v603 = vrot.slane %v601, 7
        %v604 = vor.u32 %v600, %v603
        %v605 = vrot.slane %v604, 2
        %v607 = vshll.u32 %v559, 16
        %v609 = vrot.slane %v607, 7
        %v610 = vsel %vm582, %v605, %v609
        %v612 = vshrl.u32 %v566, 16
        %v614 = vrot.slane %v612, 6
        %v615 = vshll.u32 %v566, 16
        %v617 = vrot.slane %v615, 7
        %v618 = vor.u32 %v614, %v617
        %v619 = vrot.slane %v618, 2
        %v621 = vshll.u32 %v567, 16
        %v623 = vrot.slane %v621, 7
        %v624 = vsel %vm582, %v619, %v623
        %v626 = vshrl.u32 %v574, 16
        %v628 = vrot.slane %v626, 6
        %v629 = vshll.u32 %v574, 16
        %v631 = vrot.slane %v629, 7
        %v632 = vor.u32 %v628, %v631
        %v633 = vrot.slane %v632, 2
        %v635 = vshll.u32 %v575, 16
        %v637 = vrot.slane %v635, 7
        %v638 = vsel %vm582, %v633, %v637
        %s639 = scalar_lea.vmem [#allocation7], 16
        %v640 = vld [vmem:[%s639] sm:$0xf]
        %v641 = vld [vmem:[%s639 + $0x4] sm:$0xf]
        %v642 = vld [vmem:[%s639 + $0x8] sm:$0xf]
        %v643 = vld [vmem:[%s639 + $0xc] sm:$0xf]
        %v644 = vcombine.low %v596, %v610
        %v645 = vcombine.low %v624, %v638
        %v647 = vunpack.c.l.s4 1983009808
        %v648 = vunpack.c.0.s8 %v647
        %v649 = vlaneseq
        %v650 = vshrl.u32 %v649, 7
        %v651 = vsub.s32 %v648, %v650
        %v652 = vrot.slane %v644, %v651
        %v654 = vunpack.c.l.s4 1983009808
        %v655 = vunpack.c.0.s8 %v654
        %v656 = vlaneseq
        %v657 = vshrl.u32 %v656, 7
        %v658 = vsub.s32 %v655, %v657
        %v659 = vrot.slane %v645, %v658
        %v660 = vcombine.low %v652, %v659
        %v665 = vunpack.c.l.b16 %v640
        %v666 = vunpack.c.l.b16 %v641
        %v667 = vunpack.c.l.b16 %v642
        %v668 = vunpack.c.l.b16 %v643
        %v669 = vpack.c.b16 %v666, %v665
        %v670 = vpack.c.b16 %v668, %v667
        %vm673 = vcmask 261120
        %v675 = vsel %vm673, %v660, 0
        %677 = vmatprep.subr.bf16.mxu0 0
        %678 = vmatpush1.bf16.msra.mxu0 %v669
        %679 = vmatprep.subr.bf16.mxu0 0
        %680 = vmatpush1.bf16.msra.mxu0 %v670
        %681 = vmatprep.subr.bf16.mxu0 0
        %682 = vmatpush1.bf16.msra.mxu0 0
        %683 = vmatprep.subr.bf16.mxu0 0
        %684 = vmatpush1.bf16.msra.mxu0 0
        %685 = vmatprep.subr.bf16.mxu0 0
        %686 = vmatpush1.bf16.msra.mxu0 0
        %687 = vmatprep.subr.bf16.mxu0 0
        %688 = vmatpush1.bf16.msra.mxu0 0
        %689 = vmatprep.subr.bf16.mxu0 0
        %690 = vmatpush1.bf16.msra.mxu0 0
        %691 = vmatprep.subr.bf16.mxu0 0
        %692 = vmatpush1.bf16.msra.mxu0 0
        %693 = vmatprep.subr.bf16.mxu0 0
        %694 = vmatpush1.bf16.msra.mxu0 0
        %695 = vmatprep.subr.bf16.mxu0 0
        %696 = vmatpush1.bf16.msra.mxu0 0
        %697 = vmatprep.subr.bf16.mxu0 0
        %698 = vmatpush1.bf16.msra.mxu0 0
        %699 = vmatprep.subr.bf16.mxu0 0
        %700 = vmatpush1.bf16.msra.mxu0 0
        %701 = vmatprep.subr.bf16.mxu0 0
        %702 = vmatpush1.bf16.msra.mxu0 0
        %703 = vmatprep.subr.bf16.mxu0 0
        %704 = vmatpush1.bf16.msra.mxu0 0
        %705 = vmatprep.subr.bf16.mxu0 0
        %706 = vmatpush1.bf16.msra.mxu0 0
        %707 = vmatprep.subr.bf16.mxu0 0
        %708 = vmatpush1.bf16.msra.mxu0 0
        %709 = vmatprep.mubr.bf16.mxu0 0
        %710 = vmatmul.mubr.bf16.gmra.mrb[0].mxu0 %v675
        %v711 = vpop.f32.mrb[0].mxu0
        %v712 = vadd.f32 0.0, %v711
        %v713 = vpop.f32.mrb[0].mxu0
        %v714 = vpop.f32.mrb[0].mxu0
        %v715 = vadd.f32 0.0, %v714
        %v716 = vpop.f32.mrb[0].mxu0
        %717 = vdwg.mxu0
        %v722 = vcombine.low %v528, %v529
        %v723 = vcombine.low %v530, %v531
        %v725 = vunpack.c.l.s4 1983009808
        %v726 = vunpack.c.0.s8 %v725
        %v727 = vlaneseq
        %v728 = vshrl.u32 %v727, 7
        %v729 = vsub.s32 %v726, %v728
        %v730 = vrot.slane %v722, %v729
        %v732 = vunpack.c.l.s4 1983009808
        %v733 = vunpack.c.0.s8 %v732
        %v734 = vlaneseq
        %v735 = vshrl.u32 %v734, 7
        %v736 = vsub.s32 %v733, %v735
        %v737 = vrot.slane %v723, %v736
        %v738 = vcombine.low %v730, %v737
        %v743 = vunpack.c.l.b16 %v532
        %v744 = vunpack.c.l.b16 %v533
        %v745 = vunpack.c.l.b16 %v534
        %v746 = vunpack.c.l.b16 %v535
        %v747 = vpack.c.b16 %v744, %v743
        %v748 = vpack.c.b16 %v746, %v745
        %v752 = vsel %vm673, %v738, 0
        %754 = vmatprep.subr.bf16.mxu0 0
        %755 = vmatpush1.bf16.msra.mxu0 %v747
        %756 = vmatprep.subr.bf16.mxu0 0
        %757 = vmatpush1.bf16.msra.mxu0 %v748
        %758 = vmatprep.subr.bf16.mxu0 0
        %759 = vmatpush1.bf16.msra.mxu0 0
        %760 = vmatprep.subr.bf16.mxu0 0
        %761 = vmatpush1.bf16.msra.mxu0 0
        %762 = vmatprep.subr.bf16.mxu0 0
        %763 = vmatpush1.bf16.msra.mxu0 0
        %764 = vmatprep.subr.bf16.mxu0 0
        %765 = vmatpush1.bf16.msra.mxu0 0
        %766 = vmatprep.subr.bf16.mxu0 0
        %767 = vmatpush1.bf16.msra.mxu0 0
        %768 = vmatprep.subr.bf16.mxu0 0
        %769 = vmatpush1.bf16.msra.mxu0 0
        %770 = vmatprep.subr.bf16.mxu0 0
        %771 = vmatpush1.bf16.msra.mxu0 0
        %772 = vmatprep.subr.bf16.mxu0 0
        %773 = vmatpush1.bf16.msra.mxu0 0
        %774 = vmatprep.subr.bf16.mxu0 0
        %775 = vmatpush1.bf16.msra.mxu0 0
        %776 = vmatprep.subr.bf16.mxu0 0
        %777 = vmatpush1.bf16.msra.mxu0 0
        %778 = vmatprep.subr.bf16.mxu0 0
        %779 = vmatpush1.bf16.msra.mxu0 0
        %780 = vmatprep.subr.bf16.mxu0 0
        %781 = vmatpush1.bf16.msra.mxu0 0
        %782 = vmatprep.subr.bf16.mxu0 0
        %783 = vmatpush1.bf16.msra.mxu0 0
        %784 = vmatprep.subr.bf16.mxu0 0
        %785 = vmatpush1.bf16.msra.mxu0 0
        %786 = vmatprep.mubr.bf16.mxu0 0
        %787 = vmatmul.mubr.bf16.gmra.mrb[0].mxu0 %v752
        %v788 = vpop.f32.mrb[0].mxu0
        %v789 = vadd.f32 %v712, %v788
        %v790 = vpop.f32.mrb[0].mxu0
        %v791 = vpop.f32.mrb[0].mxu0
        %v792 = vadd.f32 %v715, %v791
        %v793 = vpop.f32.mrb[0].mxu0
        %794 = vdwg.mxu0
        %v795 = vld [vmem:[#allocation3] sm:$0x6]
        %v796 = vld [vmem:[#allocation3 + $0x4] sm:$0x6]
        %v797 = vld [vmem:[#allocation3 + $0x8] sm:$0x6]
        %v798 = vld [vmem:[#allocation3 + $0xc] sm:$0x6]
        %v804 = vunpack.c.l.s4 1983009808
        %v805 = vunpack.c.0.s8 %v804
        %v806 = vlaneseq
        %v807 = vshrl.u32 %v806, 7
        %v808 = vsub.s32 %v805, %v807
        %v809 = vrot.slane %v795, %v808
        %v810 = vcombine.high %v809, %v809
        %v812 = vunpack.c.l.s4 1983009808
        %v813 = vunpack.c.0.s8 %v812
        %v814 = vlaneseq
        %v815 = vshrl.u32 %v814, 7
        %v816 = vsub.s32 %v813, %v815
        %v817 = vrot.slane %v796, %v816
        %v818 = vcombine.high %v817, %v817
        %v820 = vunpack.c.l.s4 1983009808
        %v821 = vunpack.c.0.s8 %v820
        %v822 = vlaneseq
        %v823 = vshrl.u32 %v822, 7
        %v824 = vsub.s32 %v821, %v823
        %v825 = vrot.slane %v797, %v824
        %v826 = vcombine.high %v825, %v825
        %v828 = vunpack.c.l.s4 1983009808
        %v829 = vunpack.c.0.s8 %v828
        %v830 = vlaneseq
        %v831 = vshrl.u32 %v830, 7
        %v832 = vsub.s32 %v829, %v831
        %v833 = vrot.slane %v798, %v832
        %v834 = vcombine.high %v833, %v833
        %vm835 = vcmask 1040384
        %vm836 = vcmask 1042434
        %vm837 = vmor %vm835, %vm836
        %vm838 = vcmask 1044484
        %vm839 = vmor %vm837, %vm838
        %vm840 = vcmask 1046534
        %vm841 = vmor %vm839, %vm840
        %v842 = vrot.slane %v809, 7
        %v843 = vrot.slane %v842, 2
        %v844 = vrot.slane %v810, 7
        %v845 = vsel %vm841, %v843, %v844
        %v846 = vrot.slane %v817, 7
        %v847 = vrot.slane %v846, 2
        %v848 = vrot.slane %v818, 7
        %v849 = vsel %vm841, %v847, %v848
        %v850 = vrot.slane %v825, 7
        %v851 = vrot.slane %v850, 2
        %v852 = vrot.slane %v826, 7
        %v853 = vsel %vm841, %v851, %v852
        %v854 = vrot.slane %v833, 7
        %v855 = vrot.slane %v854, 2
        %v856 = vrot.slane %v834, 7
        %v857 = vsel %vm841, %v855, %v856
        %s858 = scalar_lea.vmem [#allocation7], 32
        %v859 = vld [vmem:[%s858] sm:$0xf]
        %v860 = vld [vmem:[%s858 + $0x4] sm:$0xf]
        %v861 = vld [vmem:[%s858 + $0x8] sm:$0xf]
        %v862 = vld [vmem:[%s858 + $0xc] sm:$0xf]
        %v863 = vcombine.low %v845, %v849
        %v864 = vcombine.low %v853, %v857
        %v866 = vunpack.c.l.s4 1983009808
        %v867 = vunpack.c.0.s8 %v866
        %v868 = vlaneseq
        %v869 = vshrl.u32 %v868, 7
        %v870 = vsub.s32 %v867, %v869
        %v871 = vrot.slane %v863, %v870
        %v873 = vunpack.c.l.s4 1983009808
        %v874 = vunpack.c.0.s8 %v873
        %v875 = vlaneseq
        %v876 = vshrl.u32 %v875, 7
        %v877 = vsub.s32 %v874, %v876
        %v878 = vrot.slane %v864, %v877
        %v879 = vcombine.low %v871, %v878
        %v884 = vunpack.c.l.b16 %v859
        %v885 = vunpack.c.l.b16 %v860
        %v886 = vunpack.c.l.b16 %v861
        %v887 = vunpack.c.l.b16 %v862
        %v888 = vpack.c.b16 %v885, %v884
        %v889 = vpack.c.b16 %v887, %v886
        %v893 = vsel %vm673, %v879, 0
        %895 = vmatprep.subr.bf16.mxu0 0
        %896 = vmatpush1.bf16.msra.mxu0 %v888
        %897 = vmatprep.subr.bf16.mxu0 0
        %898 = vmatpush1.bf16.msra.mxu0 %v889
        %899 = vmatprep.subr.bf16.mxu0 0
        %900 = vmatpush1.bf16.msra.mxu0 0
        %901 = vmatprep.subr.bf16.mxu0 0
        %902 = vmatpush1.bf16.msra.mxu0 0
        %903 = vmatprep.subr.bf16.mxu0 0
        %904 = vmatpush1.bf16.msra.mxu0 0
        %905 = vmatprep.subr.bf16.mxu0 0
        %906 = vmatpush1.bf16.msra.mxu0 0
        %907 = vmatprep.subr.bf16.mxu0 0
        %908 = vmatpush1.bf16.msra.mxu0 0
        %909 = vmatprep.subr.bf16.mxu0 0
        %910 = vmatpush1.bf16.msra.mxu0 0
        %911 = vmatprep.subr.bf16.mxu0 0
        %912 = vmatpush1.bf16.msra.mxu0 0
        %913 = vmatprep.subr.bf16.mxu0 0
        %914 = vmatpush1.bf16.msra.mxu0 0
        %915 = vmatprep.subr.bf16.mxu0 0
        %916 = vmatpush1.bf16.msra.mxu0 0
        %917 = vmatprep.subr.bf16.mxu0 0
        %918 = vmatpush1.bf16.msra.mxu0 0
        %919 = vmatprep.subr.bf16.mxu0 0
        %920 = vmatpush1.bf16.msra.mxu0 0
        %921 = vmatprep.subr.bf16.mxu0 0
        %922 = vmatpush1.bf16.msra.mxu0 0
        %923 = vmatprep.subr.bf16.mxu0 0
        %924 = vmatpush1.bf16.msra.mxu0 0
        %925 = vmatprep.subr.bf16.mxu0 0
        %926 = vmatpush1.bf16.msra.mxu0 0
        %927 = vmatprep.mubr.bf16.mxu0 0
        %928 = vmatmul.mubr.bf16.gmra.mrb[0].mxu0 %v893
        %v929 = vpop.f32.mrb[0].mxu0
        %v930 = vadd.f32 0.0, %v929
        %v931 = vpop.f32.mrb[0].mxu0
        %v932 = vpop.f32.mrb[0].mxu0
        %v933 = vadd.f32 0.0, %v932
        %v934 = vpop.f32.mrb[0].mxu0
        %935 = vdwg.mxu0
        %v936 = vadd.f32 %v789, %v930
        %v937 = vadd.f32 %v792, %v933
        %938 = vst.msk [vmem:[#allocation2] sm:$0xff] %vm673, %v936
        %939 = vst.msk [vmem:[#allocation2 + $0x8] sm:$0xff] %vm673, %v937
        %v940 = vld [vmem:[%s371] sm:$0x3]
        %v941 = vld [vmem:[%s371 + $0x4] sm:$0x3]
        %v942 = vld [vmem:[%s371 + $0x8] sm:$0x3]
        %v943 = vld [vmem:[%s371 + $0xc] sm:$0x3]
        %s944 = scalar_lea.vmem [#allocation7], 48
        %v945 = vld [vmem:[%s944] sm:$0xf]
        %v946 = vld [vmem:[%s944 + $0x4] sm:$0xf]
        %v947 = vld [vmem:[%s944 + $0x8] sm:$0xf]
        %v948 = vld [vmem:[%s944 + $0xc] sm:$0xf]
        %v949 = vld [vmem:[%s371] sm:$0x7]
        %v950 = vld [vmem:[%s371 + $0x4] sm:$0x7]
        %v951 = vld [vmem:[%s371 + $0x8] sm:$0x7]
        %v952 = vld [vmem:[%s371 + $0xc] sm:$0x7]
        %v958 = vunpack.c.l.s4 1983009808
        %v959 = vunpack.c.0.s8 %v958
        %v960 = vlaneseq
        %v961 = vshrl.u32 %v960, 7
        %v962 = vsub.s32 %v959, %v961
        %v963 = vrot.slane %v949, %v962
        %v964 = vcombine.high %v963, %v963
        %v966 = vunpack.c.l.s4 1983009808
        %v967 = vunpack.c.0.s8 %v966
        %v968 = vlaneseq
        %v969 = vshrl.u32 %v968, 7
        %v970 = vsub.s32 %v967, %v969
        %v971 = vrot.slane %v950, %v970
        %v972 = vcombine.high %v971, %v971
        %v974 = vunpack.c.l.s4 1983009808
        %v975 = vunpack.c.0.s8 %v974
        %v976 = vlaneseq
        %v977 = vshrl.u32 %v976, 7
        %v978 = vsub.s32 %v975, %v977
        %v979 = vrot.slane %v951, %v978
        %v980 = vcombine.high %v979, %v979
        %v982 = vunpack.c.l.s4 1983009808
        %v983 = vunpack.c.0.s8 %v982
        %v984 = vlaneseq
        %v985 = vshrl.u32 %v984, 7
        %v986 = vsub.s32 %v983, %v985
        %v987 = vrot.slane %v952, %v986
        %v988 = vcombine.high %v987, %v987
        %v990 = vshrl.u32 %v963, 16
        %v992 = vrot.slane %v990, 6
        %v993 = vshll.u32 %v963, 16
        %v995 = vrot.slane %v993, 7
        %v996 = vor.u32 %v992, %v995
        %v997 = vrot.slane %v996, 2
        %v999 = vshll.u32 %v964, 16
        %v1001 = vrot.slane %v999, 7
        %v1002 = vsel %vm582, %v997, %v1001
        %v1004 = vshrl.u32 %v971, 16
        %v1006 = vrot.slane %v1004, 6
        %v1007 = vshll.u32 %v971, 16
        %v1009 = vrot.slane %v1007, 7
        %v1010 = vor.u32 %v1006, %v1009
        %v1011 = vrot.slane %v1010, 2
        %v1013 = vshll.u32 %v972, 16
        %v1015 = vrot.slane %v1013, 7
        %v1016 = vsel %vm582, %v1011, %v1015
        %v1018 = vshrl.u32 %v979, 16
        %v1020 = vrot.slane %v1018, 6
        %v1021 = vshll.u32 %v979, 16
        %v1023 = vrot.slane %v1021, 7
        %v1024 = vor.u32 %v1020, %v1023
        %v1025 = vrot.slane %v1024, 2
        %v1027 = vshll.u32 %v980, 16
        %v1029 = vrot.slane %v1027, 7
        %v1030 = vsel %vm582, %v1025, %v1029
        %v1032 = vshrl.u32 %v987, 16
        %v1034 = vrot.slane %v1032, 6
        %v1035 = vshll.u32 %v987, 16
        %v1037 = vrot.slane %v1035, 7
        %v1038 = vor.u32 %v1034, %v1037
        %v1039 = vrot.slane %v1038, 2
        %v1041 = vshll.u32 %v988, 16
        %v1043 = vrot.slane %v1041, 7
        %v1044 = vsel %vm582, %v1039, %v1043
        %s1045 = scalar_lea.vmem [#allocation7], 64
        %v1046 = vld [vmem:[%s1045] sm:$0xf]
        %v1047 = vld [vmem:[%s1045 + $0x4] sm:$0xf]
        %v1048 = vld [vmem:[%s1045 + $0x8] sm:$0xf]
        %v1049 = vld [vmem:[%s1045 + $0xc] sm:$0xf]
        %v1050 = vcombine.low %v1002, %v1016
        %v1051 = vcombine.low %v1030, %v1044
        %v1053 = vunpack.c.l.s4 1983009808
        %v1054 = vunpack.c.0.s8 %v1053
        %v1055 = vlaneseq
        %v1056 = vshrl.u32 %v1055, 7
        %v1057 = vsub.s32 %v1054, %v1056
        %v1058 = vrot.slane %v1050, %v1057
        %v1060 = vunpack.c.l.s4 1983009808
        %v1061 = vunpack.c.0.s8 %v1060
        %v1062 = vlaneseq
        %v1063 = vshrl.u32 %v1062, 7
        %v1064 = vsub.s32 %v1061, %v1063
        %v1065 = vrot.slane %v1051, %v1064
        %v1066 = vcombine.low %v1058, %v1065
        %v1071 = vunpack.c.l.b16 %v1046
        %v1072 = vunpack.c.l.b16 %v1047
        %v1073 = vunpack.c.l.b16 %v1048
        %v1074 = vunpack.c.l.b16 %v1049
        %v1075 = vpack.c.b16 %v1072, %v1071
        %v1076 = vpack.c.b16 %v1074, %v1073
        %v1080 = vsel %vm673, %v1066, 0
        %1082 = vmatprep.subr.bf16.mxu0 0
        %1083 = vmatpush1.bf16.msra.mxu0 %v1075
        %1084 = vmatprep.subr.bf16.mxu0 0
        %1085 = vmatpush1.bf16.msra.mxu0 %v1076
        %1086 = vmatprep.subr.bf16.mxu0 0
        %1087 = vmatpush1.bf16.msra.mxu0 0
        %1088 = vmatprep.subr.bf16.mxu0 0
        %1089 = vmatpush1.bf16.msra.mxu0 0
        %1090 = vmatprep.subr.bf16.mxu0 0
        %1091 = vmatpush1.bf16.msra.mxu0 0
        %1092 = vmatprep.subr.bf16.mxu0 0
        %1093 = vmatpush1.bf16.msra.mxu0 0
        %1094 = vmatprep.subr.bf16.mxu0 0
        %1095 = vmatpush1.bf16.msra.mxu0 0
        %1096 = vmatprep.subr.bf16.mxu0 0
        %1097 = vmatpush1.bf16.msra.mxu0 0
        %1098 = vmatprep.subr.bf16.mxu0 0
        %1099 = vmatpush1.bf16.msra.mxu0 0
        %1100 = vmatprep.subr.bf16.mxu0 0
        %1101 = vmatpush1.bf16.msra.mxu0 0
        %1102 = vmatprep.subr.bf16.mxu0 0
        %1103 = vmatpush1.bf16.msra.mxu0 0
        %1104 = vmatprep.subr.bf16.mxu0 0
        %1105 = vmatpush1.bf16.msra.mxu0 0
        %1106 = vmatprep.subr.bf16.mxu0 0
        %1107 = vmatpush1.bf16.msra.mxu0 0
        %1108 = vmatprep.subr.bf16.mxu0 0
        %1109 = vmatpush1.bf16.msra.mxu0 0
        %1110 = vmatprep.subr.bf16.mxu0 0
        %1111 = vmatpush1.bf16.msra.mxu0 0
        %1112 = vmatprep.subr.bf16.mxu0 0
        %1113 = vmatpush1.bf16.msra.mxu0 0
        %1114 = vmatprep.mubr.bf16.mxu0 0
        %1115 = vmatmul.mubr.bf16.gmra.mrb[0].mxu0 %v1080
        %v1116 = vpop.f32.mrb[0].mxu0
        %v1117 = vadd.f32 0.0, %v1116
        %v1118 = vpop.f32.mrb[0].mxu0
        %v1119 = vpop.f32.mrb[0].mxu0
        %v1120 = vadd.f32 0.0, %v1119
        %v1121 = vpop.f32.mrb[0].mxu0
        %1122 = vdwg.mxu0
        %v1127 = vcombine.low %v940, %v941
        %v1128 = vcombine.low %v942, %v943
        %v1130 = vunpack.c.l.s4 1983009808
        %v1131 = vunpack.c.0.s8 %v1130
        %v1132 = vlaneseq
        %v1133 = vshrl.u32 %v1132, 7
        %v1134 = vsub.s32 %v1131, %v1133
        %v1135 = vrot.slane %v1127, %v1134
        %v1137 = vunpack.c.l.s4 1983009808
        %v1138 = vunpack.c.0.s8 %v1137
        %v1139 = vlaneseq
        %v1140 = vshrl.u32 %v1139, 7
        %v1141 = vsub.s32 %v1138, %v1140
        %v1142 = vrot.slane %v1128, %v1141
        %v1143 = vcombine.low %v1135, %v1142
        %v1148 = vunpack.c.l.b16 %v945
        %v1149 = vunpack.c.l.b16 %v946
        %v1150 = vunpack.c.l.b16 %v947
        %v1151 = vunpack.c.l.b16 %v948
        %v1152 = vpack.c.b16 %v1149, %v1148
        %v1153 = vpack.c.b16 %v1151, %v1150
        %v1157 = vsel %vm673, %v1143, 0
        %1159 = vmatprep.subr.bf16.mxu0 0
        %1160 = vmatpush1.bf16.msra.mxu0 %v1152
        %1161 = vmatprep.subr.bf16.mxu0 0
        %1162 = vmatpush1.bf16.msra.mxu0 %v1153
        %1163 = vmatprep.subr.bf16.mxu0 0
        %1164 = vmatpush1.bf16.msra.mxu0 0
        %1165 = vmatprep.subr.bf16.mxu0 0
        %1166 = vmatpush1.bf16.msra.mxu0 0
        %1167 = vmatprep.subr.bf16.mxu0 0
        %1168 = vmatpush1.bf16.msra.mxu0 0
        %1169 = vmatprep.subr.bf16.mxu0 0
        %1170 = vmatpush1.bf16.msra.mxu0 0
        %1171 = vmatprep.subr.bf16.mxu0 0
        %1172 = vmatpush1.bf16.msra.mxu0 0
        %1173 = vmatprep.subr.bf16.mxu0 0
        %1174 = vmatpush1.bf16.msra.mxu0 0
        %1175 = vmatprep.subr.bf16.mxu0 0
        %1176 = vmatpush1.bf16.msra.mxu0 0
        %1177 = vmatprep.subr.bf16.mxu0 0
        %1178 = vmatpush1.bf16.msra.mxu0 0
        %1179 = vmatprep.subr.bf16.mxu0 0
        %1180 = vmatpush1.bf16.msra.mxu0 0
        %1181 = vmatprep.subr.bf16.mxu0 0
        %1182 = vmatpush1.bf16.msra.mxu0 0
        %1183 = vmatprep.subr.bf16.mxu0 0
        %1184 = vmatpush1.bf16.msra.mxu0 0
        %1185 = vmatprep.subr.bf16.mxu0 0
        %1186 = vmatpush1.bf16.msra.mxu0 0
        %1187 = vmatprep.subr.bf16.mxu0 0
        %1188 = vmatpush1.bf16.msra.mxu0 0
        %1189 = vmatprep.subr.bf16.mxu0 0
        %1190 = vmatpush1.bf16.msra.mxu0 0
        %1191 = vmatprep.mubr.bf16.mxu0 0
        %1192 = vmatmul.mubr.bf16.gmra.mrb[0].mxu0 %v1157
        %v1193 = vpop.f32.mrb[0].mxu0
        %v1194 = vadd.f32 %v1117, %v1193
        %v1195 = vpop.f32.mrb[0].mxu0
        %v1196 = vpop.f32.mrb[0].mxu0
        %v1197 = vadd.f32 %v1120, %v1196
        %v1198 = vpop.f32.mrb[0].mxu0
        %1199 = vdwg.mxu0
        %v1200 = vld [vmem:[%s371] sm:$0x6]
        %v1201 = vld [vmem:[%s371 + $0x4] sm:$0x6]
        %v1202 = vld [vmem:[%s371 + $0x8] sm:$0x6]
        %v1203 = vld [vmem:[%s371 + $0xc] sm:$0x6]
        %v1209 = vunpack.c.l.s4 1983009808
        %v1210 = vunpack.c.0.s8 %v1209
        %v1211 = vlaneseq
        %v1212 = vshrl.u32 %v1211, 7
        %v1213 = vsub.s32 %v1210, %v1212
        %v1214 = vrot.slane %v1200, %v1213
        %v1215 = vcombine.high %v1214, %v1214
        %v1217 = vunpack.c.l.s4 1983009808
        %v1218 = vunpack.c.0.s8 %v1217
        %v1219 = vlaneseq
        %v1220 = vshrl.u32 %v1219, 7
        %v1221 = vsub.s32 %v1218, %v1220
        %v1222 = vrot.slane %v1201, %v1221
        %v1223 = vcombine.high %v1222, %v1222
        %v1225 = vunpack.c.l.s4 1983009808
        %v1226 = vunpack.c.0.s8 %v1225
        %v1227 = vlaneseq
        %v1228 = vshrl.u32 %v1227, 7
        %v1229 = vsub.s32 %v1226, %v1228
        %v1230 = vrot.slane %v1202, %v1229
        %v1231 = vcombine.high %v1230, %v1230
        %v1233 = vunpack.c.l.s4 1983009808
        %v1234 = vunpack.c.0.s8 %v1233
        %v1235 = vlaneseq
        %v1236 = vshrl.u32 %v1235, 7
        %v1237 = vsub.s32 %v1234, %v1236
        %v1238 = vrot.slane %v1203, %v1237
        %v1239 = vcombine.high %v1238, %v1238
        %v1240 = vrot.slane %v1214, 7
        %v1241 = vrot.slane %v1240, 2
        %v1242 = vrot.slane %v1215, 7
        %v1243 = vsel %vm841, %v1241, %v1242
        %v1244 = vrot.slane %v1222, 7
        %v1245 = vrot.slane %v1244, 2
        %v1246 = vrot.slane %v1223, 7
        %v1247 = vsel %vm841, %v1245, %v1246
        %v1248 = vrot.slane %v1230, 7
        %v1249 = vrot.slane %v1248, 2
        %v1250 = vrot.slane %v1231, 7
        %v1251 = vsel %vm841, %v1249, %v1250
        %v1252 = vrot.slane %v1238, 7
        %v1253 = vrot.slane %v1252, 2
        %v1254 = vrot.slane %v1239, 7
        %v1255 = vsel %vm841, %v1253, %v1254
        %s1256 = scalar_lea.vmem [#allocation7], 80
        %v1257 = vld [vmem:[%s1256] sm:$0xf]
        %v1258 = vld [vmem:[%s1256 + $0x4] sm:$0xf]
        %v1259 = vld [vmem:[%s1256 + $0x8] sm:$0xf]
        %v1260 = vld [vmem:[%s1256 + $0xc] sm:$0xf]
        %v1261 = vcombine.low %v1243, %v1247
        %v1262 = vcombine.low %v1251, %v1255
        %v1264 = vunpack.c.l.s4 1983009808
        %v1265 = vunpack.c.0.s8 %v1264
        %v1266 = vlaneseq
        %v1267 = vshrl.u32 %v1266, 7
        %v1268 = vsub.s32 %v1265, %v1267
        %v1269 = vrot.slane %v1261, %v1268
        %v1271 = vunpack.c.l.s4 1983009808
        %v1272 = vunpack.c.0.s8 %v1271
        %v1273 = vlaneseq
        %v1274 = vshrl.u32 %v1273, 7
        %v1275 = vsub.s32 %v1272, %v1274
        %v1276 = vrot.slane %v1262, %v1275
        %v1277 = vcombine.low %v1269, %v1276
        %v1282 = vunpack.c.l.b16 %v1257
        %v1283 = vunpack.c.l.b16 %v1258
        %v1284 = vunpack.c.l.b16 %v1259
        %v1285 = vunpack.c.l.b16 %v1260
        %v1286 = vpack.c.b16 %v1283, %v1282
        %v1287 = vpack.c.b16 %v1285, %v1284
        %v1291 = vsel %vm673, %v1277, 0
        %1293 = vmatprep.subr.bf16.mxu0 0
        %1294 = vmatpush1.bf16.msra.mxu0 %v1286
        %1295 = vmatprep.subr.bf16.mxu0 0
        %1296 = vmatpush1.bf16.msra.mxu0 %v1287
        %1297 = vmatprep.subr.bf16.mxu0 0
        %1298 = vmatpush1.bf16.msra.mxu0 0
        %1299 = vmatprep.subr.bf16.mxu0 0
        %1300 = vmatpush1.bf16.msra.mxu0 0
        %1301 = vmatprep.subr.bf16.mxu0 0
        %1302 = vmatpush1.bf16.msra.mxu0 0
        %1303 = vmatprep.subr.bf16.mxu0 0
        %1304 = vmatpush1.bf16.msra.mxu0 0
        %1305 = vmatprep.subr.bf16.mxu0 0
        %1306 = vmatpush1.bf16.msra.mxu0 0
        %1307 = vmatprep.subr.bf16.mxu0 0
        %1308 = vmatpush1.bf16.msra.mxu0 0
        %1309 = vmatprep.subr.bf16.mxu0 0
        %1310 = vmatpush1.bf16.msra.mxu0 0
        %1311 = vmatprep.subr.bf16.mxu0 0
        %1312 = vmatpush1.bf16.msra.mxu0 0
        %1313 = vmatprep.subr.bf16.mxu0 0
        %1314 = vmatpush1.bf16.msra.mxu0 0
        %1315 = vmatprep.subr.bf16.mxu0 0
        %1316 = vmatpush1.bf16.msra.mxu0 0
        %1317 = vmatprep.subr.bf16.mxu0 0
        %1318 = vmatpush1.bf16.msra.mxu0 0
        %1319 = vmatprep.subr.bf16.mxu0 0
        %1320 = vmatpush1.bf16.msra.mxu0 0
        %1321 = vmatprep.subr.bf16.mxu0 0
        %1322 = vmatpush1.bf16.msra.mxu0 0
        %1323 = vmatprep.subr.bf16.mxu0 0
        %1324 = vmatpush1.bf16.msra.mxu0 0
        %1325 = vmatprep.mubr.bf16.mxu0 0
        %1326 = vmatmul.mubr.bf16.gmra.mrb[0].mxu0 %v1291
        %v1327 = vpop.f32.mrb[0].mxu0
        %v1328 = vadd.f32 0.0, %v1327
        %v1329 = vpop.f32.mrb[0].mxu0
        %v1330 = vpop.f32.mrb[0].mxu0
        %v1331 = vadd.f32 0.0, %v1330
        %v1332 = vpop.f32.mrb[0].mxu0
        %1333 = vdwg.mxu0
        %v1334 = vadd.f32 %v1194, %v1328
        %v1335 = vadd.f32 %v1197, %v1331
        %v1336 = vld [vmem:[#allocation2] sm:$0xff]
        %v1337 = vld [vmem:[#allocation2 + $0x8] sm:$0xff]
        %v1338 = vadd.f32 %v1336, %v1334
        %v1339 = vadd.f32 %v1337, %v1335
        %1340 = vst.msk [vmem:[#allocation2] sm:$0xff] %vm673, %v1338
        %1341 = vst.msk [vmem:[#allocation2 + $0x8] sm:$0xff] %vm673, %v1339
        %s1342 = scalar_lea.vmem [#allocation3], 8
        %v1343 = vld [vmem:[%s1342] sm:$0x3]
        %v1344 = vld [vmem:[%s1342 + $0x4] sm:$0x3]
        %v1345 = vld [vmem:[%s1342 + $0x8] sm:$0x3]
        %v1346 = vld [vmem:[%s1342 + $0xc] sm:$0x3]
        %s1347 = scalar_lea.vmem [#allocation7], 96
        %v1348 = vld [vmem:[%s1347] sm:$0xf]
        %v1349 = vld [vmem:[%s1347 + $0x4] sm:$0xf]
        %v1350 = vld [vmem:[%s1347 + $0x8] sm:$0xf]
        %v1351 = vld [vmem:[%s1347 + $0xc] sm:$0xf]
        %v1352 = vld [vmem:[%s1342] sm:$0x7]
        %v1353 = vld [vmem:[%s1342 + $0x4] sm:$0x7]
        %v1354 = vld [vmem:[%s1342 + $0x8] sm:$0x7]
        %v1355 = vld [vmem:[%s1342 + $0xc] sm:$0x7]
        %v1361 = vunpack.c.l.s4 1983009808
        %v1362 = vunpack.c.0.s8 %v1361
        %v1363 = vlaneseq
        %v1364 = vshrl.u32 %v1363, 7
        %v1365 = vsub.s32 %v1362, %v1364
        %v1366 = vrot.slane %v1352, %v1365
        %v1367 = vcombine.high %v1366, %v1366
        %v1369 = vunpack.c.l.s4 1983009808
        %v1370 = vunpack.c.0.s8 %v1369
        %v1371 = vlaneseq
        %v1372 = vshrl.u32 %v1371, 7
        %v1373 = vsub.s32 %v1370, %v1372
        %v1374 = vrot.slane %v1353, %v1373
        %v1375 = vcombine.high %v1374, %v1374
        %v1377 = vunpack.c.l.s4 1983009808
        %v1378 = vunpack.c.0.s8 %v1377
        %v1379 = vlaneseq
        %v1380 = vshrl.u32 %v1379, 7
        %v1381 = vsub.s32 %v1378, %v1380
        %v1382 = vrot.slane %v1354, %v1381
        %v1383 = vcombine.high %v1382, %v1382
        %v1385 = vunpack.c.l.s4 1983009808
        %v1386 = vunpack.c.0.s8 %v1385
        %v1387 = vlaneseq
        %v1388 = vshrl.u32 %v1387, 7
        %v1389 = vsub.s32 %v1386, %v1388
        %v1390 = vrot.slane %v1355, %v1389
        %v1391 = vcombine.high %v1390, %v1390
        %v1393 = vshrl.u32 %v1366, 16
        %v1395 = vrot.slane %v1393, 6
        %v1396 = vshll.u32 %v1366, 16
        %v1398 = vrot.slane %v1396, 7
        %v1399 = vor.u32 %v1395, %v1398
        %v1400 = vrot.slane %v1399, 2
        %v1402 = vshll.u32 %v1367, 16
        %v1404 = vrot.slane %v1402, 7
        %v1405 = vsel %vm582, %v1400, %v1404
        %v1407 = vshrl.u32 %v1374, 16
        %v1409 = vrot.slane %v1407, 6
        %v1410 = vshll.u32 %v1374, 16
        %v1412 = vrot.slane %v1410, 7
        %v1413 = vor.u32 %v1409, %v1412
        %v1414 = vrot.slane %v1413, 2
        %v1416 = vshll.u32 %v1375, 16
        %v1418 = vrot.slane %v1416, 7
        %v1419 = vsel %vm582, %v1414, %v1418
        %v1421 = vshrl.u32 %v1382, 16
        %v1423 = vrot.slane %v1421, 6
        %v1424 = vshll.u32 %v1382, 16
        %v1426 = vrot.slane %v1424, 7
        %v1427 = vor.u32 %v1423, %v1426
        %v1428 = vrot.slane %v1427, 2
        %v1430 = vshll.u32 %v1383, 16
        %v1432 = vrot.slane %v1430, 7
        %v1433 = vsel %vm582, %v1428, %v1432
        %v1435 = vshrl.u32 %v1390, 16
        %v1437 = vrot.slane %v1435, 6
        %v1438 = vshll.u32 %v1390, 16
        %v1440 = vrot.slane %v1438, 7
        %v1441 = vor.u32 %v1437, %v1440
        %v1442 = vrot.slane %v1441, 2
        %v1444 = vshll.u32 %v1391, 16
        %v1446 = vrot.slane %v1444, 7
        %v1447 = vsel %vm582, %v1442, %v1446
        %s1448 = scalar_lea.vmem [#allocation7], 112
        %v1449 = vld [vmem:[%s1448] sm:$0xf]
        %v1450 = vld [vmem:[%s1448 + $0x4] sm:$0xf]
        %v1451 = vld [vmem:[%s1448 + $0x8] sm:$0xf]
        %v1452 = vld [vmem:[%s1448 + $0xc] sm:$0xf]
        %v1453 = vcombine.low %v1405, %v1419
        %v1454 = vcombine.low %v1433, %v1447
        %v1456 = vunpack.c.l.s4 1983009808
        %v1457 = vunpack.c.0.s8 %v1456
        %v1458 = vlaneseq
        %v1459 = vshrl.u32 %v1458, 7
        %v1460 = vsub.s32 %v1457, %v1459
        %v1461 = vrot.slane %v1453, %v1460
        %v1463 = vunpack.c.l.s4 1983009808
        %v1464 = vunpack.c.0.s8 %v1463
        %v1465 = vlaneseq
        %v1466 = vshrl.u32 %v1465, 7
        %v1467 = vsub.s32 %v1464, %v1466
        %v1468 = vrot.slane %v1454, %v1467
        %v1469 = vcombine.low %v1461, %v1468
        %v1474 = vunpack.c.l.b16 %v1449
        %v1475 = vunpack.c.l.b16 %v1450
        %v1476 = vunpack.c.l.b16 %v1451
        %v1477 = vunpack.c.l.b16 %v1452
        %v1478 = vpack.c.b16 %v1475, %v1474
        %v1479 = vpack.c.b16 %v1477, %v1476
        %v1483 = vsel %vm673, %v1469, 0
        %1485 = vmatprep.subr.bf16.mxu0 0
        %1486 = vmatpush1.bf16.msra.mxu0 %v1478
        %1487 = vmatprep.subr.bf16.mxu0 0
        %1488 = vmatpush1.bf16.msra.mxu0 %v1479
        %1489 = vmatprep.subr.bf16.mxu0 0
        %1490 = vmatpush1.bf16.msra.mxu0 0
        %1491 = vmatprep.subr.bf16.mxu0 0
        %1492 = vmatpush1.bf16.msra.mxu0 0
        %1493 = vmatprep.subr.bf16.mxu0 0
        %1494 = vmatpush1.bf16.msra.mxu0 0
        %1495 = vmatprep.subr.bf16.mxu0 0
        %1496 = vmatpush1.bf16.msra.mxu0 0
        %1497 = vmatprep.subr.bf16.mxu0 0
        %1498 = vmatpush1.bf16.msra.mxu0 0
        %1499 = vmatprep.subr.bf16.mxu0 0
        %1500 = vmatpush1.bf16.msra.mxu0 0
        %1501 = vmatprep.subr.bf16.mxu0 0
        %1502 = vmatpush1.bf16.msra.mxu0 0
        %1503 = vmatprep.subr.bf16.mxu0 0
        %1504 = vmatpush1.bf16.msra.mxu0 0
        %1505 = vmatprep.subr.bf16.mxu0 0
        %1506 = vmatpush1.bf16.msra.mxu0 0
        %1507 = vmatprep.subr.bf16.mxu0 0
        %1508 = vmatpush1.bf16.msra.mxu0 0
        %1509 = vmatprep.subr.bf16.mxu0 0
        %1510 = vmatpush1.bf16.msra.mxu0 0
        %1511 = vmatprep.subr.bf16.mxu0 0
        %1512 = vmatpush1.bf16.msra.mxu0 0
        %1513 = vmatprep.subr.bf16.mxu0 0
        %1514 = vmatpush1.bf16.msra.mxu0 0
        %1515 = vmatprep.subr.bf16.mxu0 0
        %1516 = vmatpush1.bf16.msra.mxu0 0
        %1517 = vmatprep.mubr.bf16.mxu0 0
        %1518 = vmatmul.mubr.bf16.gmra.mrb[0].mxu0 %v1483
        %v1519 = vpop.f32.mrb[0].mxu0
        %v1520 = vadd.f32 0.0, %v1519
        %v1521 = vpop.f32.mrb[0].mxu0
        %v1522 = vpop.f32.mrb[0].mxu0
        %v1523 = vadd.f32 0.0, %v1522
        %v1524 = vpop.f32.mrb[0].mxu0
        %1525 = vdwg.mxu0
        %v1530 = vcombine.low %v1343, %v1344
        %v1531 = vcombine.low %v1345, %v1346
        %v1533 = vunpack.c.l.s4 1983009808
        %v1534 = vunpack.c.0.s8 %v1533
        %v1535 = vlaneseq
        %v1536 = vshrl.u32 %v1535, 7
        %v1537 = vsub.s32 %v1534, %v1536
        %v1538 = vrot.slane %v1530, %v1537
        %v1540 = vunpack.c.l.s4 1983009808
        %v1541 = vunpack.c.0.s8 %v1540
        %v1542 = vlaneseq
        %v1543 = vshrl.u32 %v1542, 7
        %v1544 = vsub.s32 %v1541, %v1543
        %v1545 = vrot.slane %v1531, %v1544
        %v1546 = vcombine.low %v1538, %v1545
        %v1551 = vunpack.c.l.b16 %v1348
        %v1552 = vunpack.c.l.b16 %v1349
        %v1553 = vunpack.c.l.b16 %v1350
        %v1554 = vunpack.c.l.b16 %v1351
        %v1555 = vpack.c.b16 %v1552, %v1551
        %v1556 = vpack.c.b16 %v1554, %v1553
        %v1560 = vsel %vm673, %v1546, 0
        %1562 = vmatprep.subr.bf16.mxu0 0
        %1563 = vmatpush1.bf16.msra.mxu0 %v1555
        %1564 = vmatprep.subr.bf16.mxu0 0
        %1565 = vmatpush1.bf16.msra.mxu0 %v1556
        %1566 = vmatprep.subr.bf16.mxu0 0
        %1567 = vmatpush1.bf16.msra.mxu0 0
        %1568 = vmatprep.subr.bf16.mxu0 0
        %1569 = vmatpush1.bf16.msra.mxu0 0
        %1570 = vmatprep.subr.bf16.mxu0 0
        %1571 = vmatpush1.bf16.msra.mxu0 0
        %1572 = vmatprep.subr.bf16.mxu0 0
        %1573 = vmatpush1.bf16.msra.mxu0 0
        %1574 = vmatprep.subr.bf16.mxu0 0
        %1575 = vmatpush1.bf16.msra.mxu0 0
        %1576 = vmatprep.subr.bf16.mxu0 0
        %1577 = vmatpush1.bf16.msra.mxu0 0
        %1578 = vmatprep.subr.bf16.mxu0 0
        %1579 = vmatpush1.bf16.msra.mxu0 0
        %1580 = vmatprep.subr.bf16.mxu0 0
        %1581 = vmatpush1.bf16.msra.mxu0 0
        %1582 = vmatprep.subr.bf16.mxu0 0
        %1583 = vmatpush1.bf16.msra.mxu0 0
        %1584 = vmatprep.subr.bf16.mxu0 0
        %1585 = vmatpush1.bf16.msra.mxu0 0
        %1586 = vmatprep.subr.bf16.mxu0 0
        %1587 = vmatpush1.bf16.msra.mxu0 0
        %1588 = vmatprep.subr.bf16.mxu0 0
        %1589 = vmatpush1.bf16.msra.mxu0 0
        %1590 = vmatprep.subr.bf16.mxu0 0
        %1591 = vmatpush1.bf16.msra.mxu0 0
        %1592 = vmatprep.subr.bf16.mxu0 0
        %1593 = vmatpush1.bf16.msra.mxu0 0
        %1594 = vmatprep.mubr.bf16.mxu0 0
        %1595 = vmatmul.mubr.bf16.gmra.mrb[0].mxu0 %v1560
        %v1596 = vpop.f32.mrb[0].mxu0
        %v1597 = vadd.f32 %v1520, %v1596
        %v1598 = vpop.f32.mrb[0].mxu0
        %v1599 = vpop.f32.mrb[0].mxu0
        %v1600 = vadd.f32 %v1523, %v1599
        %v1601 = vpop.f32.mrb[0].mxu0
        %1602 = vdwg.mxu0
        %v1603 = vld [vmem:[%s1342] sm:$0x6]
        %v1604 = vld [vmem:[%s1342 + $0x4] sm:$0x6]
        %v1605 = vld [vmem:[%s1342 + $0x8] sm:$0x6]
        %v1606 = vld [vmem:[%s1342 + $0xc] sm:$0x6]
        %v1612 = vunpack.c.l.s4 1983009808
        %v1613 = vunpack.c.0.s8 %v1612
        %v1614 = vlaneseq
        %v1615 = vshrl.u32 %v1614, 7
        %v1616 = vsub.s32 %v1613, %v1615
        %v1617 = vrot.slane %v1603, %v1616
        %v1618 = vcombine.high %v1617, %v1617
        %v1620 = vunpack.c.l.s4 1983009808
        %v1621 = vunpack.c.0.s8 %v1620
        %v1622 = vlaneseq
        %v1623 = vshrl.u32 %v1622, 7
        %v1624 = vsub.s32 %v1621, %v1623
        %v1625 = vrot.slane %v1604, %v1624
        %v1626 = vcombine.high %v1625, %v1625
        %v1628 = vunpack.c.l.s4 1983009808
        %v1629 = vunpack.c.0.s8 %v1628
        %v1630 = vlaneseq
        %v1631 = vshrl.u32 %v1630, 7
        %v1632 = vsub.s32 %v1629, %v1631
        %v1633 = vrot.slane %v1605, %v1632
        %v1634 = vcombine.high %v1633, %v1633
        %v1636 = vunpack.c.l.s4 1983009808
        %v1637 = vunpack.c.0.s8 %v1636
        %v1638 = vlaneseq
        %v1639 = vshrl.u32 %v1638, 7
        %v1640 = vsub.s32 %v1637, %v1639
        %v1641 = vrot.slane %v1606, %v1640
        %v1642 = vcombine.high %v1641, %v1641
        %v1643 = vrot.slane %v1617, 7
        %v1644 = vrot.slane %v1643, 2
        %v1645 = vrot.slane %v1618, 7
        %v1646 = vsel %vm841, %v1644, %v1645
        %v1647 = vrot.slane %v1625, 7
        %v1648 = vrot.slane %v1647, 2
        %v1649 = vrot.slane %v1626, 7
        %v1650 = vsel %vm841, %v1648, %v1649
        %v1651 = vrot.slane %v1633, 7
        %v1652 = vrot.slane %v1651, 2
        %v1653 = vrot.slane %v1634, 7
        %v1654 = vsel %vm841, %v1652, %v1653
        %v1655 = vrot.slane %v1641, 7
        %v1656 = vrot.slane %v1655, 2
        %v1657 = vrot.slane %v1642, 7
        %v1658 = vsel %vm841, %v1656, %v1657
        %s1659 = scalar_lea.vmem [#allocation7], 128
        %v1660 = vld [vmem:[%s1659] sm:$0xf]
        %v1661 = vld [vmem:[%s1659 + $0x4] sm:$0xf]
        %v1662 = vld [vmem:[%s1659 + $0x8] sm:$0xf]
        %v1663 = vld [vmem:[%s1659 + $0xc] sm:$0xf]
        %v1664 = vcombine.low %v1646, %v1650
        %v1665 = vcombine.low %v1654, %v1658
        %v1667 = vunpack.c.l.s4 1983009808
        %v1668 = vunpack.c.0.s8 %v1667
        %v1669 = vlaneseq
        %v1670 = vshrl.u32 %v1669, 7
        %v1671 = vsub.s32 %v1668, %v1670
        %v1672 = vrot.slane %v1664, %v1671
        %v1674 = vunpack.c.l.s4 1983009808
        %v1675 = vunpack.c.0.s8 %v1674
        %v1676 = vlaneseq
        %v1677 = vshrl.u32 %v1676, 7
        %v1678 = vsub.s32 %v1675, %v1677
        %v1679 = vrot.slane %v1665, %v1678
        %v1680 = vcombine.low %v1672, %v1679
        %v1685 = vunpack.c.l.b16 %v1660
        %v1686 = vunpack.c.l.b16 %v1661
        %v1687 = vunpack.c.l.b16 %v1662
        %v1688 = vunpack.c.l.b16 %v1663
        %v1689 = vpack.c.b16 %v1686, %v1685
        %v1690 = vpack.c.b16 %v1688, %v1687
        %v1694 = vsel %vm673, %v1680, 0
        %1696 = vmatprep.subr.bf16.mxu0 0
        %1697 = vmatpush1.bf16.msra.mxu0 %v1689
        %1698 = vmatprep.subr.bf16.mxu0 0
        %1699 = vmatpush1.bf16.msra.mxu0 %v1690
        %1700 = vmatprep.subr.bf16.mxu0 0
        %1701 = vmatpush1.bf16.msra.mxu0 0
        %1702 = vmatprep.subr.bf16.mxu0 0
        %1703 = vmatpush1.bf16.msra.mxu0 0
        %1704 = vmatprep.subr.bf16.mxu0 0
        %1705 = vmatpush1.bf16.msra.mxu0 0
        %1706 = vmatprep.subr.bf16.mxu0 0
        %1707 = vmatpush1.bf16.msra.mxu0 0
        %1708 = vmatprep.subr.bf16.mxu0 0
        %1709 = vmatpush1.bf16.msra.mxu0 0
        %1710 = vmatprep.subr.bf16.mxu0 0
        %1711 = vmatpush1.bf16.msra.mxu0 0
        %1712 = vmatprep.subr.bf16.mxu0 0
        %1713 = vmatpush1.bf16.msra.mxu0 0
        %1714 = vmatprep.subr.bf16.mxu0 0
        %1715 = vmatpush1.bf16.msra.mxu0 0
        %1716 = vmatprep.subr.bf16.mxu0 0
        %1717 = vmatpush1.bf16.msra.mxu0 0
        %1718 = vmatprep.subr.bf16.mxu0 0
        %1719 = vmatpush1.bf16.msra.mxu0 0
        %1720 = vmatprep.subr.bf16.mxu0 0
        %1721 = vmatpush1.bf16.msra.mxu0 0
        %1722 = vmatprep.subr.bf16.mxu0 0
        %1723 = vmatpush1.bf16.msra.mxu0 0
        %1724 = vmatprep.subr.bf16.mxu0 0
        %1725 = vmatpush1.bf16.msra.mxu0 0
        %1726 = vmatprep.subr.bf16.mxu0 0
        %1727 = vmatpush1.bf16.msra.mxu0 0
        %1728 = vmatprep.mubr.bf16.mxu0 0
        %1729 = vmatmul.mubr.bf16.gmra.mrb[0].mxu0 %v1694
        %v1730 = vpop.f32.mrb[0].mxu0
        %v1731 = vadd.f32 0.0, %v1730
        %v1732 = vpop.f32.mrb[0].mxu0
        %v1733 = vpop.f32.mrb[0].mxu0
        %v1734 = vadd.f32 0.0, %v1733
        %v1735 = vpop.f32.mrb[0].mxu0
        %1736 = vdwg.mxu0
        %v1737 = vadd.f32 %v1597, %v1731
        %v1738 = vadd.f32 %v1600, %v1734
        %v1739 = vld [vmem:[#allocation2] sm:$0xff]
        %v1740 = vld [vmem:[#allocation2 + $0x8] sm:$0xff]
        %v1741 = vadd.f32 %v1739, %v1737
        %v1742 = vadd.f32 %v1740, %v1738
        %1743 = vst.msk [vmem:[#allocation2] sm:$0xff] %vm673, %v1741
        %1744 = vst.msk [vmem:[#allocation2 + $0x8] sm:$0xff] %vm673, %v1742
        %v1745 = vld [vmem:[#allocation2] sm:$0xff]
        %v1746 = vld [vmem:[#allocation2 + $0x8] sm:$0xff]
        %v1747 = vld [vmem:[%s2] sm:$0x1]
        %v1749 = vlaneseq
        %v1750 = vshrl.u32 %v1749, 7
        %v1751 = vsub.s32 0, %v1750
        %v1752 = vrot.slane %v1747, %v1751
        %v1754 = vadd.f32 %v1745, %v1752
        %v1755 = vadd.f32 %v1746, %v1752
        %v1758 = vcombine.high %v1754, %v1754
        %v1759 = vcombine.high %v1755, %v1755
        %vm1762 = vcmask 257024
        %1763 = vst.msk [vmem:[%s217] sm:$0xf] %vm1762, %v1754
        %1764 = vst.msk [vmem:[%s217 + $0x4] sm:$0xf] %vm1762, %v1758
        %1765 = vst.msk [vmem:[%s217 + $0x8] sm:$0xf] %vm1762, %v1755
        %1766 = vst.msk [vmem:[%s217 + $0xc] sm:$0xf] %vm1762, %v1759
        %s1767 = sand.u32 %s111, 1
        %s1768 = scalar_lea.sflag [#allocation6], %s1767
        %s1769 = sand.u32 %s111, 1
        %s1770 = smul.addr %s1769, 16
        %s1771 = scalar_lea.vmem [#allocation9], %s1770
        // Predicated region
        $region57: #{tpu_custom_call.1} parent=31 // pred_check
          %p1772 = pneg %p121
        $region58: #{tpu_custom_call.1} parent=31 // pred_check_branch
          %1774 = sbr.rel (%p1772) target = $region60
        $region59: #{tpu_custom_call.1} parent=31 // pred_region
          %s1775 = smul.u32 4, %s26
          %s1777 = ssub.s32 256, 256
          %1778 = vsyncadd %s1768, %s1777
          %s1779 = smul.addr %s25, 4
          %s1780 = sadd.s32 %s1775, %s1779
          %s1781 = smul.addr %s1780, 64
          %s1782 = scalar_lea.hbm %s3, %s1781
          %s1783 = sshll.u32 %s1771, 4
          %s1784 = int_to_ptr.vmem [resolvable:$true] %s1783
          %1789 = dma.vmem_to_hbm [thread:$0]  %s1784, 256, %s1782, %s1768, 64, 64, 4
        $region60: #{tpu_custom_call.1} parent=31 // pred_fallthru
          _
      $region32: #{tpu_custom_call.1} parent=5 // pred_fallthru
        _
      %p1790 = scmp.le.s32.totalorder 2, %s16
      // Predicated region
      $region61: #{tpu_custom_call.1} parent=5 // pred_check
        %p1791 = pneg %p1790
      $region62: #{tpu_custom_call.1} parent=5 // pred_check_branch
        %1793 = sbr.rel (%p1791) target = $region64
      $region63: #{tpu_custom_call.1} parent=5 // pred_region
        %s1794 = ssub.s32 %s16, 2
        // Predicated region
        $region65: #{tpu_custom_call.1} parent=63 // pred_check
          %p1795 = pneg %p127
        $region66: #{tpu_custom_call.1} parent=63 // pred_check_branch
          %1797 = sbr.rel (%p1795) target = $region68
        $region67: #{tpu_custom_call.1} parent=63 // pred_region
          %s1798 = sand.u32 %s112, 1
          %s1799 = scalar_lea.sflag [#allocation6], %s1798
          %s1800 = sand.u32 %s112, 1
          %s1801 = smul.addr %s1800, 16
          %s1802 = scalar_lea.vmem [#allocation9], %s1801
          %1803 = dma.done %s1799, 256
        $region68: #{tpu_custom_call.1} parent=63 // pred_fallthru
          _
      $region64: #{tpu_custom_call.1} parent=5 // pred_fallthru
        _
    $region6: #{tpu_custom_call.1} parent=1 // loop_footer
      %s20 = sadd.s32 1, %s16
    $region7: #{tpu_custom_call.1} parent=1 // loop_footer_branch
      %15 = sbr.rel target = $region3
    $region8: #{tpu_custom_call.1} parent=1 // loop_exit
      _
    %1804 = vsyncpa [#allocation5], 1
    %s1805 = scalar_lea.sflag [#allocation5], 1
    %1806 = vsyncpa %s1805, 1
    %1807 = vsyncpa [#allocation8], 1
    %1808 = vsyncpa [#allocation6], 1
    %s1809 = scalar_lea.sflag [#allocation6], 1
    %1810 = vsyncpa %s1809, 1

</llo_original>
